<compile_context>
chip_gen: v6e
topology: v6e:2x2x1
jax: 0.10.0
libtpu: 0.0.40
codegen_flags: <defaults>
</compile_context>

<pallas_src>
import jax
import jax.numpy as jnp
from jax.experimental import pallas as pl
from jax.experimental.pallas import tpu as pltpu

# ---- constants implied by the module (exp = Experiment(...)) ----
N_SAMPLES = 2 ** 15          # exp.n_samples
KSIZE = 512                  # exp.kernel_size
IMPULSE = 128                # impulse_size
SR = 22050                   # int(exp.samplerate)
SP1 = SR // 150              # 147
SP2 = SR // 110              # 200
LANES = 128
ROWS = N_SAMPLES // LANES    # 256
HALO = 8                     # f32 sublane-aligned zero halo on each side of scratch
PAD_ROWS = ROWS + 2 * HALO   # 272


# ------------------------------------------------------------------ kernel ---
def model_kernel(wlhs_ref, wrhs_ref, b_ref, o_ref, pad_ref):
    f32, bf16 = jnp.float32, jnp.bfloat16

    # ---- final = signal + conv(signal, delay_kernel) : ONE fused bf16 MXU matmul.
    # The identity (signal pass-through) is folded into the LHS (kern[0] += 1),
    # so no separate signal input or elementwise add is needed.
    final = jnp.dot(wlhs_ref[...], wrhs_ref[...], preferred_element_type=f32)
    final_bf = final.astype(bf16)                                # packed once

    # ---- stage `final` with an 8-row zero halo (aligned stores only) ----
    pad_ref[pl.ds(0, HALO), :] = jnp.zeros((HALO, LANES), f32)
    pad_ref[pl.ds(HALO + ROWS, HALO), :] = jnp.zeros((HALO, LANES), f32)
    pad_ref[pl.ds(HALO, ROWS), :] = final

    # ---- 512-tap FIR (padding=256) as 5 accumulating (256,128)x(128,128) dots ----
    # lane-block (s+2) of b_ref holds the banded-Toeplitz taps for row-shift s.
    acc = jnp.dot(final_bf, b_ref[pl.ds(2 * LANES, LANES), :],   # s = 0, from regs
                  preferred_element_type=f32)
    for s in (-2, -1, 1, 2):
        blk = pad_ref[pl.ds(HALO + s, ROWS), :].astype(bf16)     # shifted window
        acc = acc + jnp.dot(blk, b_ref[pl.ds((s + 2) * LANES, LANES), :],
                            preferred_element_type=f32)

    # ---- max_norm: row-wise VALU max tree, one lane reduction, EUP reciprocal ----
    mx = jnp.max(jnp.abs(acc), axis=0, keepdims=True)            # (1, 128)
    mx = jnp.max(mx, axis=1, keepdims=True)                      # (1, 1)
    o_ref[...] = acc * pl.reciprocal(mx + 1e-8, approx=True)


# ------------------------------------------------------------- param setup ---
def make_filter_bank(n_filters=128, size=KSIZE, sr=float(SR)):
    # TODO(synk): deterministic synthetic morlet-style bank standing in for
    # exp.fb.filter_bank (zounds), which cannot be reproduced in-script.
    freqs = jnp.geomspace(20.0, sr / 2.0 - 25.0, n_filters).astype(jnp.float32)
    tt = (jnp.arange(size, dtype=jnp.float32) - size / 2.0) / sr
    win = jnp.exp(-(tt[None, :] ** 2) * (freqs[:, None] ** 2) * 50.0)
    fb = win * jnp.sin(2.0 * jnp.pi * freqs[:, None] * tt[None, :])
    fb = fb / (jnp.linalg.norm(fb, axis=-1, keepdims=True) + 1e-8)
    return fb


def build_operands(noise):
    """Constant / layout work: kern & FIR operands constant-fold under jit;
    only the small noise-Toeplitz gather is a runtime op."""
    f32, bf16 = jnp.float32, jnp.bfloat16
    noise = noise.astype(f32)

    # --- compile-time-constant cross-faded delay kernel (exact integer combs),
    #     with a unit impulse folded in so the wet matmul yields signal + wet. ---
    t = jnp.arange(N_SAMPLES, dtype=jnp.int32)
    up = t.astype(f32) / float(N_SAMPLES - 1)          # linspace(0,1,N)
    dec = 1.0 - up                                     # linspace(1,0,N)
    env5 = dec ** 5
    m1 = (t % SP1 == 0).astype(f32)
    m2 = (t % SP2 == 0).astype(f32)
    kern = m1 * env5 * up + m2 * env5 * dec ** 4       # cross_fade(k1, k2)
    kern = kern.at[0].add(1.0)                         # + identity (signal term)
    kern2d = kern.reshape(ROWS, LANES)
    kshift = jnp.concatenate([jnp.zeros((1, LANES), f32), kern2d[:-1]], axis=0)
    wet_lhs = jnp.concatenate([kern2d, kshift], axis=1).astype(bf16)   # (256,256)

    # --- Toeplitz blocks of the 128-tap impulse: final2d = kern'@T1 + kshift'@T2 ---
    idx = jnp.arange(LANES)
    d = idx[None, :] - idx[:, None]                            # c - j
    T1 = jnp.where(d >= 0, noise[jnp.clip(d, 0, LANES - 1)], 0.0)
    T2 = jnp.where(d < 0, noise[jnp.clip(d + LANES, 0, LANES - 1)], 0.0)
    wet_rhs = jnp.concatenate([T1, T2], axis=0).astype(bf16)           # (256,128)

    # --- banded Toeplitz blocks of the 512-tap FIR, one (128,128) block per shift ---
    w = make_filter_bank()[:40].sum(axis=0).astype(f32)                # (512,)
    diff = idx[:, None] - idx[None, :]                                 # j - c
    Bs = []
    for s in range(-2, 3):
        k = s * LANES + KSIZE // 2 + diff
        valid = (k >= 0) & (k < KSIZE)
        Bs.append(jnp.where(valid, w[jnp.clip(k, 0, KSIZE - 1)], 0.0))
    B = jnp.concatenate(Bs, axis=0).astype(bf16)                       # (640,128)
    return wet_lhs, wet_rhs, B, w


# ----------------------------------------------------------------- wrapper ---
@jax.jit
def model_forward(noise, x):
    # x (the module input) only determines the device in the original code.
    del x
    wet_lhs, wet_rhs, B, _ = build_operands(noise)
    out2d = pl.pallas_call(
        model_kernel,
        out_shape=jax.ShapeDtypeStruct((ROWS, LANES), jnp.float32),
        in_specs=[pl.BlockSpec(memory_space=pltpu.MemorySpace.VMEM)] * 3,
        out_specs=pl.BlockSpec(memory_space=pltpu.MemorySpace.VMEM),
        scratch_shapes=[pltpu.VMEM((PAD_ROWS, LANES), jnp.float32)],
    )(wet_lhs, wet_rhs, B)
    return out2d.reshape(1, 1, N_SAMPLES)


# ---------------------------------------------------------- pure-JAX check ---
def reference(noise):
    f32 = jnp.float32
    t = jnp.arange(N_SAMPLES)
    m1 = (t % SP1 == 0).astype(f32)
    m2 = (t % SP2 == 0).astype(f32)
    up = t.astype(f32) / float(N_SAMPLES - 1)
    dec = 1.0 - up
    kern = m1 * dec ** 5 * up + m2 * dec ** 5 * dec ** 4
    signal = jnp.zeros((N_SAMPLES,), f32).at[:IMPULSE].set(noise.astype(f32))
    wet = jnp.convolve(kern, noise.astype(f32), precision='highest')[:N_SAMPLES]
    final = signal + wet
    w = make_filter_bank()[:40].sum(axis=0).astype(f32)
    padded = jnp.pad(final, (KSIZE // 2, KSIZE // 2))
    filt = jnp.correlate(padded, w, mode='valid', precision='highest')[:N_SAMPLES]
    return filt / (jnp.max(jnp.abs(filt)) + 1e-8)


# -------------------------------------------------------------------- main ---
if __name__ == "__main__":
    key = jax.random.PRNGKey(0)
    k_blah, k_noise, k_x = jax.random.split(key, 3)

    # nn.Parameter blah (unused in forward) -- deterministic init
    blah = jax.random.uniform(k_blah, (10,), minval=-1.0, maxval=1.0)
    # in-forward uniform noise (torch uses uniform_ each call; here deterministic)
    noise = jax.random.uniform(k_noise, (IMPULSE,), minval=-1.0, maxval=1.0,
                               dtype=jnp.float32)
    # module input (only its device is used by the original forward)
    x = jax.random.normal(k_x, (1, 1, N_SAMPLES), dtype=jnp.float32)

    out = jax.block_until_ready(model_forward(noise, x))

    assert out.shape == (1, 1, N_SAMPLES)
    assert bool(jnp.all(jnp.isfinite(out)))

    ref = reference(noise)
    err = float(jnp.max(jnp.abs(out.reshape(-1) - ref)))
    # bf16 MXU operands (~2^-8 relative) on both convolutions plus the approx
    # reciprocal (~1e-3) on a max-normalized signal -> expected max-abs error
    # ~3e-3 - 6e-3; 2e-2 bound still catches structural errors (those are O(0.1-1)).
    assert err < 2e-2, f"mismatch vs reference: {err}"

    print("KERNEL_OK")
</pallas_src>

<mosaic_0001>
module attributes {stable_mosaic.version = 11 : i64} {
  func.func @model_kernel(%arg0: memref<256x256xbf16, #tpu.memory_space<vmem>>, %arg1: memref<256x128xbf16, #tpu.memory_space<vmem>>, %arg2: memref<640x128xbf16, #tpu.memory_space<vmem>>, %arg3: memref<256x128xf32, #tpu.memory_space<vmem>>, %arg4: memref<272x128xf32, #tpu.memory_space<vmem>>) attributes {dimension_semantics = [], scalar_prefetch = 0 : i64, scratch_operands = 1 : i64, tpu.core_type = #tpu.core_type<tc>} {
    %c0 = arith.constant 0 : index
    %c0_0 = arith.constant 0 : index
    %0 = vector.load %arg0[%c0, %c0_0] : memref<256x256xbf16, #tpu.memory_space<vmem>>, vector<256x256xbf16>
    %c0_1 = arith.constant 0 : index
    %c0_2 = arith.constant 0 : index
    %1 = vector.load %arg1[%c0_1, %c0_2] : memref<256x128xbf16, #tpu.memory_space<vmem>>, vector<256x128xbf16>
    %cst = arith.constant dense<0.000000e+00> : vector<256x128xf32>
    %2 = tpu.matmul %0, %1, %cst {dimension_numbers = #tpu.dot_dimension_numbers<[1], [0], [0], [1], [0, 0, 1, 1], [], []>} : vector<256x256xbf16>, vector<256x128xbf16>, vector<256x128xf32> -> vector<256x128xf32>
    %3 = arith.truncf %2 : vector<256x128xf32> to vector<256x128xbf16>
    %cst_3 = arith.constant 0.000000e+00 : f32
    %4 = vector.broadcast %cst_3 : f32 to vector<8x128xf32>
    %c0_4 = arith.constant 0 : index
    %c0_5 = arith.constant 0 : index
    %5 = vector.load %arg4[%c0_4, %c0_5] : memref<272x128xf32, #tpu.memory_space<vmem>>, vector<8x128xf32>
    tpu.vector_store %arg4[%c0_4, %c0_5], %4 {strides = array<i32>} : memref<272x128xf32, #tpu.memory_space<vmem>>, vector<8x128xf32>,
    %cst_6 = arith.constant 0.000000e+00 : f32
    %6 = vector.broadcast %cst_6 : f32 to vector<8x128xf32>
    %c264 = arith.constant 264 : index
    %c0_7 = arith.constant 0 : index
    %7 = vector.load %arg4[%c264, %c0_7] : memref<272x128xf32, #tpu.memory_space<vmem>>, vector<8x128xf32>
    tpu.vector_store %arg4[%c264, %c0_7], %6 {strides = array<i32>} : memref<272x128xf32, #tpu.memory_space<vmem>>, vector<8x128xf32>,
    %c8 = arith.constant 8 : index
    %c0_8 = arith.constant 0 : index
    %8 = vector.load %arg4[%c8, %c0_8] : memref<272x128xf32, #tpu.memory_space<vmem>>, vector<256x128xf32>
    tpu.vector_store %arg4[%c8, %c0_8], %2 {strides = array<i32>} : memref<272x128xf32, #tpu.memory_space<vmem>>, vector<256x128xf32>,
    %c256 = arith.constant 256 : index
    %c0_9 = arith.constant 0 : index
    %9 = vector.load %arg2[%c256, %c0_9] : memref<640x128xbf16, #tpu.memory_space<vmem>>, vector<128x128xbf16>
    %cst_10 = arith.constant dense<0.000000e+00> : vector<256x128xf32>
    %10 = tpu.matmul %3, %9, %cst_10 {dimension_numbers = #tpu.dot_dimension_numbers<[1], [0], [0], [1], [0, 0, 1, 1], [], []>} : vector<256x128xbf16>, vector<128x128xbf16>, vector<256x128xf32> -> vector<256x128xf32>
    %c6 = arith.constant 6 : index
    %c0_11 = arith.constant 0 : index
    %11 = vector.load %arg4[%c6, %c0_11] : memref<272x128xf32, #tpu.memory_space<vmem>>, vector<256x128xf32>
    %12 = arith.truncf %11 : vector<256x128xf32> to vector<256x128xbf16>
    %c0_12 = arith.constant 0 : index
    %c0_13 = arith.constant 0 : index
    %13 = vector.load %arg2[%c0_12, %c0_13] : memref<640x128xbf16, #tpu.memory_space<vmem>>, vector<128x128xbf16>
    %cst_14 = arith.constant dense<0.000000e+00> : vector<256x128xf32>
    %14 = tpu.matmul %12, %13, %cst_14 {dimension_numbers = #tpu.dot_dimension_numbers<[1], [0], [0], [1], [0, 0, 1, 1], [], []>} : vector<256x128xbf16>, vector<128x128xbf16>, vector<256x128xf32> -> vector<256x128xf32>
    %15 = arith.addf %10, %14 : vector<256x128xf32>
    %c7 = arith.constant 7 : index
    %c0_15 = arith.constant 0 : index
    %16 = vector.load %arg4[%c7, %c0_15] : memref<272x128xf32, #tpu.memory_space<vmem>>, vector<256x128xf32>
    %17 = arith.truncf %16 : vector<256x128xf32> to vector<256x128xbf16>
    %c128 = arith.constant 128 : index
    %c0_16 = arith.constant 0 : index
    %18 = vector.load %arg2[%c128, %c0_16] : memref<640x128xbf16, #tpu.memory_space<vmem>>, vector<128x128xbf16>
    %cst_17 = arith.constant dense<0.000000e+00> : vector<256x128xf32>
    %19 = tpu.matmul %17, %18, %cst_17 {dimension_numbers = #tpu.dot_dimension_numbers<[1], [0], [0], [1], [0, 0, 1, 1], [], []>} : vector<256x128xbf16>, vector<128x128xbf16>, vector<256x128xf32> -> vector<256x128xf32>
    %20 = arith.addf %15, %19 : vector<256x128xf32>
    %c9 = arith.constant 9 : index
    %c0_18 = arith.constant 0 : index
    %21 = vector.load %arg4[%c9, %c0_18] : memref<272x128xf32, #tpu.memory_space<vmem>>, vector<256x128xf32>
    %22 = arith.truncf %21 : vector<256x128xf32> to vector<256x128xbf16>
    %c384 = arith.constant 384 : index
    %c0_19 = arith.constant 0 : index
    %23 = vector.load %arg2[%c384, %c0_19] : memref<640x128xbf16, #tpu.memory_space<vmem>>, vector<128x128xbf16>
    %cst_20 = arith.constant dense<0.000000e+00> : vector<256x128xf32>
    %24 = tpu.matmul %22, %23, %cst_20 {dimension_numbers = #tpu.dot_dimension_numbers<[1], [0], [0], [1], [0, 0, 1, 1], [], []>} : vector<256x128xbf16>, vector<128x128xbf16>, vector<256x128xf32> -> vector<256x128xf32>
    %25 = arith.addf %20, %24 : vector<256x128xf32>
    %c10 = arith.constant 10 : index
    %c0_21 = arith.constant 0 : index
    %26 = vector.load %arg4[%c10, %c0_21] : memref<272x128xf32, #tpu.memory_space<vmem>>, vector<256x128xf32>
    %27 = arith.truncf %26 : vector<256x128xf32> to vector<256x128xbf16>
    %c512 = arith.constant 512 : index
    %c0_22 = arith.constant 0 : index
    %28 = vector.load %arg2[%c512, %c0_22] : memref<640x128xbf16, #tpu.memory_space<vmem>>, vector<128x128xbf16>
    %cst_23 = arith.constant dense<0.000000e+00> : vector<256x128xf32>
    %29 = tpu.matmul %27, %28, %cst_23 {dimension_numbers = #tpu.dot_dimension_numbers<[1], [0], [0], [1], [0, 0, 1, 1], [], []>} : vector<256x128xbf16>, vector<128x128xbf16>, vector<256x128xf32> -> vector<256x128xf32>
    %30 = arith.addf %25, %29 : vector<256x128xf32>
    %31 = math.absf %30 : vector<256x128xf32>
    %cst_24 = arith.constant dense<0xFF800000> : vector<128xf32>
    %32 = vector.multi_reduction <maximumf>, %31, %cst_24 [0] : vector<256x128xf32> to vector<128xf32>
    %33 = vector.shape_cast %32 : vector<128xf32> to vector<1x128xf32>
    %cst_25 = arith.constant dense<0xFF800000> : vector<1xf32>
    %34 = vector.multi_reduction <maximumf>, %33, %cst_25 [1] : vector<1x128xf32> to vector<1xf32>
    %35 = vector.shape_cast %34 : vector<1xf32> to vector<1x1xf32>
    %cst_26 = arith.constant 9.99999993E-9 : f32
    %36 = vector.broadcast %cst_26 : f32 to vector<1x1xf32>
    %37 = arith.addf %35, %36 : vector<1x1xf32>
    %38 = tpu.reciprocal %37 {approx = true} : vector<1x1xf32> -> vector<1x1xf32>
    %39 = vector.broadcast %38 : vector<1x1xf32> to vector<256x128xf32>
    %40 = arith.mulf %30, %39 : vector<256x128xf32>
    %c0_27 = arith.constant 0 : index
    %c0_28 = arith.constant 0 : index
    %41 = vector.load %arg3[%c0_27, %c0_28] : memref<256x128xf32, #tpu.memory_space<vmem>>, vector<256x128xf32>
    tpu.vector_store %arg3[%c0_27, %c0_28], %40 {strides = array<i32>} : memref<256x128xf32, #tpu.memory_space<vmem>>, vector<256x128xf32>,
    return
  }
}

</mosaic_0001>

<llo_original>
// kernel: model_forward.1
$region0: #{model_forward.1}
  #allocation0 [shape = 'u32[]', space=smem, size = 0x4, offset = 0x4, fixed_abs, tag = 'smem constant byte address 0x4 - core index']
  #allocation1 [shape = 'u32[144,128]{1,0:T(1,128)}', space=vmem, size = 0x12000, scoped, tag = 'internal scratch']
  #allocation2 [shape = 'f32[272,128]{1,0:T(8,128)}', space=vmem, size = 0x22000, scoped, tag = 'scratch operand']
  %s0 = inlined_call_operand.vmem [shape: bf16[256,256], index: 0, kind: input, shape index: {}]
  %s1 = inlined_call_operand.vmem [shape: bf16[256,128], index: 1, kind: input, shape index: {}]
  %s2 = inlined_call_operand.vmem [shape: bf16[640,128], index: 2, kind: input, shape index: {}]
  %s3 = inlined_call_operand.hbm [shape: f32[256,128], index: 3, kind: output, shape index: {}]
  %s4 = sld [smem:[#allocation0]]
  $region22: #{model_forward.1} parent=0
    _
  %s6 = ssub.s32 1, %s4
  %s7 = scalar_select 0, %s6, %s4
  $region1: #{model_forward.1} parent=0
    #allocation3 [shape = 'u8[131072]{0}', space=vmem, size = 0x20000, scoped, tag = 'output window, operand 0, single buffered']
    #allocation4 [shape = 's32[1]{0}', space=sflag, size = 0x4, scoped, tag = 'scoped memory for model_forward.1']
    %8 = vsyncpa [#allocation4], 0
    // Predicated region
    $region2: #{model_forward.1} parent=1 // pred_check
      _
    $region3: #{model_forward.1} parent=1 // pred_check_branch
      %10 = sbr.rel (0) target = $region5
    $region4: #{model_forward.1} parent=1 // pred_region
      _
    $region5: #{model_forward.1} parent=1 // pred_fallthru
      _
    // Predicated region
    $region6: #{model_forward.1} parent=1 // pred_check
      _
    $region7: #{model_forward.1} parent=1 // pred_check_branch
      %12 = sbr.rel (0) target = $region9
    $region8: #{model_forward.1} parent=1 // pred_region
      _
    $region9: #{model_forward.1} parent=1 // pred_fallthru
      _
    // Predicated region
    $region10: #{model_forward.1} parent=1 // pred_check
      _
    $region11: #{model_forward.1} parent=1 // pred_check_branch
      %14 = sbr.rel (0) target = $region13
    $region12: #{model_forward.1} parent=1 // pred_region
      _
    $region13: #{model_forward.1} parent=1 // pred_fallthru
      _
    %v16 = vld [vmem:[%s0] sm:$0xff]
    %v17 = vld [vmem:[%s0 + $0x8] sm:$0xff]
    %v18 = vld [vmem:[%s0 + $0x10] sm:$0xff]
    %v19 = vld [vmem:[%s0 + $0x18] sm:$0xff]
    %v20 = vld [vmem:[%s0 + $0x20] sm:$0xff]
    %v21 = vld [vmem:[%s0 + $0x28] sm:$0xff]
    %v22 = vld [vmem:[%s0 + $0x30] sm:$0xff]
    %v23 = vld [vmem:[%s0 + $0x38] sm:$0xff]
    %v24 = vld [vmem:[%s0 + $0x40] sm:$0xff]
    %v25 = vld [vmem:[%s0 + $0x48] sm:$0xff]
    %v26 = vld [vmem:[%s0 + $0x50] sm:$0xff]
    %v27 = vld [vmem:[%s0 + $0x58] sm:$0xff]
    %v28 = vld [vmem:[%s0 + $0x60] sm:$0xff]
    %v29 = vld [vmem:[%s0 + $0x68] sm:$0xff]
    %v30 = vld [vmem:[%s0 + $0x70] sm:$0xff]
    %v31 = vld [vmem:[%s0 + $0x78] sm:$0xff]
    %v32 = vld [vmem:[%s0 + $0x80] sm:$0xff]
    %v33 = vld [vmem:[%s0 + $0x88] sm:$0xff]
    %v34 = vld [vmem:[%s0 + $0x90] sm:$0xff]
    %v35 = vld [vmem:[%s0 + $0x98] sm:$0xff]
    %v36 = vld [vmem:[%s0 + $0xa0] sm:$0xff]
    %v37 = vld [vmem:[%s0 + $0xa8] sm:$0xff]
    %v38 = vld [vmem:[%s0 + $0xb0] sm:$0xff]
    %v39 = vld [vmem:[%s0 + $0xb8] sm:$0xff]
    %v40 = vld [vmem:[%s0 + $0xc0] sm:$0xff]
    %v41 = vld [vmem:[%s0 + $0xc8] sm:$0xff]
    %v42 = vld [vmem:[%s0 + $0xd0] sm:$0xff]
    %v43 = vld [vmem:[%s0 + $0xd8] sm:$0xff]
    %v44 = vld [vmem:[%s0 + $0xe0] sm:$0xff]
    %v45 = vld [vmem:[%s0 + $0xe8] sm:$0xff]
    %v46 = vld [vmem:[%s0 + $0xf0] sm:$0xff]
    %v47 = vld [vmem:[%s0 + $0xf8] sm:$0xff]
    %v48 = vld [vmem:[%s1] sm:$0xf]
    %v49 = vld [vmem:[%s1 + $0x4] sm:$0xf]
    %v50 = vld [vmem:[%s1 + $0x8] sm:$0xf]
    %v51 = vld [vmem:[%s1 + $0xc] sm:$0xf]
    %v52 = vld [vmem:[%s1 + $0x10] sm:$0xf]
    %v53 = vld [vmem:[%s1 + $0x14] sm:$0xf]
    %v54 = vld [vmem:[%s1 + $0x18] sm:$0xf]
    %v55 = vld [vmem:[%s1 + $0x1c] sm:$0xf]
    %v56 = vld [vmem:[%s1 + $0x20] sm:$0xf]
    %v57 = vld [vmem:[%s1 + $0x24] sm:$0xf]
    %v58 = vld [vmem:[%s1 + $0x28] sm:$0xf]
    %v59 = vld [vmem:[%s1 + $0x2c] sm:$0xf]
    %v60 = vld [vmem:[%s1 + $0x30] sm:$0xf]
    %v61 = vld [vmem:[%s1 + $0x34] sm:$0xf]
    %v62 = vld [vmem:[%s1 + $0x38] sm:$0xf]
    %v63 = vld [vmem:[%s1 + $0x3c] sm:$0xf]
    %v64 = vld [vmem:[%s1 + $0x40] sm:$0xf]
    %v65 = vld [vmem:[%s1 + $0x44] sm:$0xf]
    %v66 = vld [vmem:[%s1 + $0x48] sm:$0xf]
    %v67 = vld [vmem:[%s1 + $0x4c] sm:$0xf]
    %v68 = vld [vmem:[%s1 + $0x50] sm:$0xf]
    %v69 = vld [vmem:[%s1 + $0x54] sm:$0xf]
    %v70 = vld [vmem:[%s1 + $0x58] sm:$0xf]
    %v71 = vld [vmem:[%s1 + $0x5c] sm:$0xf]
    %v72 = vld [vmem:[%s1 + $0x60] sm:$0xf]
    %v73 = vld [vmem:[%s1 + $0x64] sm:$0xf]
    %v74 = vld [vmem:[%s1 + $0x68] sm:$0xf]
    %v75 = vld [vmem:[%s1 + $0x6c] sm:$0xf]
    %v76 = vld [vmem:[%s1 + $0x70] sm:$0xf]
    %v77 = vld [vmem:[%s1 + $0x74] sm:$0xf]
    %v78 = vld [vmem:[%s1 + $0x78] sm:$0xf]
    %v79 = vld [vmem:[%s1 + $0x7c] sm:$0xf]
    %v112 = vunpack.c.l.b16 %v16
    %v113 = vunpack.c.h.b16 %v16
    %v114 = vunpack.c.l.b16 %v17
    %v115 = vunpack.c.h.b16 %v17
    %v116 = vunpack.c.l.b16 %v18
    %v117 = vunpack.c.h.b16 %v18
    %v118 = vunpack.c.l.b16 %v19
    %v119 = vunpack.c.h.b16 %v19
    %v120 = vunpack.c.l.b16 %v20
    %v121 = vunpack.c.h.b16 %v20
    %v122 = vunpack.c.l.b16 %v21
    %v123 = vunpack.c.h.b16 %v21
    %v124 = vunpack.c.l.b16 %v22
    %v125 = vunpack.c.h.b16 %v22
    %v126 = vunpack.c.l.b16 %v23
    %v127 = vunpack.c.h.b16 %v23
    %v128 = vunpack.c.l.b16 %v24
    %v129 = vunpack.c.h.b16 %v24
    %v130 = vunpack.c.l.b16 %v25
    %v131 = vunpack.c.h.b16 %v25
    %v132 = vunpack.c.l.b16 %v26
    %v133 = vunpack.c.h.b16 %v26
    %v134 = vunpack.c.l.b16 %v27
    %v135 = vunpack.c.h.b16 %v27
    %v136 = vunpack.c.l.b16 %v28
    %v137 = vunpack.c.h.b16 %v28
    %v138 = vunpack.c.l.b16 %v29
    %v139 = vunpack.c.h.b16 %v29
    %v140 = vunpack.c.l.b16 %v30
    %v141 = vunpack.c.h.b16 %v30
    %v142 = vunpack.c.l.b16 %v31
    %v143 = vunpack.c.h.b16 %v31
    %v144 = vunpack.c.l.b16 %v32
    %v145 = vunpack.c.h.b16 %v32
    %v146 = vunpack.c.l.b16 %v33
    %v147 = vunpack.c.h.b16 %v33
    %v148 = vunpack.c.l.b16 %v34
    %v149 = vunpack.c.h.b16 %v34
    %v150 = vunpack.c.l.b16 %v35
    %v151 = vunpack.c.h.b16 %v35
    %v152 = vunpack.c.l.b16 %v36
    %v153 = vunpack.c.h.b16 %v36
    %v154 = vunpack.c.l.b16 %v37
    %v155 = vunpack.c.h.b16 %v37
    %v156 = vunpack.c.l.b16 %v38
    %v157 = vunpack.c.h.b16 %v38
    %v158 = vunpack.c.l.b16 %v39
    %v159 = vunpack.c.h.b16 %v39
    %v160 = vunpack.c.l.b16 %v40
    %v161 = vunpack.c.h.b16 %v40
    %v162 = vunpack.c.l.b16 %v41
    %v163 = vunpack.c.h.b16 %v41
    %v164 = vunpack.c.l.b16 %v42
    %v165 = vunpack.c.h.b16 %v42
    %v166 = vunpack.c.l.b16 %v43
    %v167 = vunpack.c.h.b16 %v43
    %v168 = vunpack.c.l.b16 %v44
    %v169 = vunpack.c.h.b16 %v44
    %v170 = vunpack.c.l.b16 %v45
    %v171 = vunpack.c.h.b16 %v45
    %v172 = vunpack.c.l.b16 %v46
    %v173 = vunpack.c.h.b16 %v46
    %v174 = vunpack.c.l.b16 %v47
    %v175 = vunpack.c.h.b16 %v47
    %v176 = vpack.c.b16 %v114, %v112
    %v177 = vpack.c.b16 %v115, %v113
    %v178 = vpack.c.b16 %v118, %v116
    %v179 = vpack.c.b16 %v119, %v117
    %v180 = vpack.c.b16 %v122, %v120
    %v181 = vpack.c.b16 %v123, %v121
    %v182 = vpack.c.b16 %v126, %v124
    %v183 = vpack.c.b16 %v127, %v125
    %v184 = vpack.c.b16 %v130, %v128
    %v185 = vpack.c.b16 %v131, %v129
    %v186 = vpack.c.b16 %v134, %v132
    %v187 = vpack.c.b16 %v135, %v133
    %v188 = vpack.c.b16 %v138, %v136
    %v189 = vpack.c.b16 %v139, %v137
    %v190 = vpack.c.b16 %v142, %v140
    %v191 = vpack.c.b16 %v143, %v141
    %v192 = vpack.c.b16 %v146, %v144
    %v193 = vpack.c.b16 %v147, %v145
    %v194 = vpack.c.b16 %v150, %v148
    %v195 = vpack.c.b16 %v151, %v149
    %v196 = vpack.c.b16 %v154, %v152
    %v197 = vpack.c.b16 %v155, %v153
    %v198 = vpack.c.b16 %v158, %v156
    %v199 = vpack.c.b16 %v159, %v157
    %v200 = vpack.c.b16 %v162, %v160
    %v201 = vpack.c.b16 %v163, %v161
    %v202 = vpack.c.b16 %v166, %v164
    %v203 = vpack.c.b16 %v167, %v165
    %v204 = vpack.c.b16 %v170, %v168
    %v205 = vpack.c.b16 %v171, %v169
    %v206 = vpack.c.b16 %v174, %v172
    %v207 = vpack.c.b16 %v175, %v173
    %v272 = vunpack.c.l.b16 %v48
    %v273 = vunpack.c.l.b16 %v49
    %v274 = vunpack.c.l.b16 %v50
    %v275 = vunpack.c.l.b16 %v51
    %v276 = vunpack.c.l.b16 %v52
    %v277 = vunpack.c.l.b16 %v53
    %v278 = vunpack.c.l.b16 %v54
    %v279 = vunpack.c.l.b16 %v55
    %v280 = vunpack.c.l.b16 %v56
    %v281 = vunpack.c.l.b16 %v57
    %v282 = vunpack.c.l.b16 %v58
    %v283 = vunpack.c.l.b16 %v59
    %v284 = vunpack.c.l.b16 %v60
    %v285 = vunpack.c.l.b16 %v61
    %v286 = vunpack.c.l.b16 %v62
    %v287 = vunpack.c.l.b16 %v63
    %v288 = vunpack.c.l.b16 %v64
    %v289 = vunpack.c.l.b16 %v65
    %v290 = vunpack.c.l.b16 %v66
    %v291 = vunpack.c.l.b16 %v67
    %v292 = vunpack.c.l.b16 %v68
    %v293 = vunpack.c.l.b16 %v69
    %v294 = vunpack.c.l.b16 %v70
    %v295 = vunpack.c.l.b16 %v71
    %v296 = vunpack.c.l.b16 %v72
    %v297 = vunpack.c.l.b16 %v73
    %v298 = vunpack.c.l.b16 %v74
    %v299 = vunpack.c.l.b16 %v75
    %v300 = vunpack.c.l.b16 %v76
    %v301 = vunpack.c.l.b16 %v77
    %v302 = vunpack.c.l.b16 %v78
    %v303 = vunpack.c.l.b16 %v79
    %v304 = vpack.c.b16 %v273, %v272
    %v305 = vpack.c.b16 %v275, %v274
    %v306 = vpack.c.b16 %v277, %v276
    %v307 = vpack.c.b16 %v279, %v278
    %v308 = vpack.c.b16 %v281, %v280
    %v309 = vpack.c.b16 %v283, %v282
    %v310 = vpack.c.b16 %v285, %v284
    %v311 = vpack.c.b16 %v287, %v286
    %v312 = vpack.c.b16 %v289, %v288
    %v313 = vpack.c.b16 %v291, %v290
    %v314 = vpack.c.b16 %v293, %v292
    %v315 = vpack.c.b16 %v295, %v294
    %v316 = vpack.c.b16 %v297, %v296
    %v317 = vpack.c.b16 %v299, %v298
    %v318 = vpack.c.b16 %v301, %v300
    %v319 = vpack.c.b16 %v303, %v302
    %336 = vmatprep.subr.bf16.mxu0 0
    %337 = vmatpush1.bf16.msra.mxu0 %v311
    %338 = vmatprep.subr.bf16.mxu0 0
    %339 = vmatpush1.bf16.msra.mxu0 %v310
    %340 = vmatprep.subr.bf16.mxu0 0
    %341 = vmatpush1.bf16.msra.mxu0 %v309
    %342 = vmatprep.subr.bf16.mxu0 0
    %343 = vmatpush1.bf16.msra.mxu0 %v308
    %344 = vmatprep.subr.bf16.mxu0 0
    %345 = vmatpush1.bf16.msra.mxu0 %v307
    %346 = vmatprep.subr.bf16.mxu0 0
    %347 = vmatpush1.bf16.msra.mxu0 %v306
    %348 = vmatprep.subr.bf16.mxu0 0
    %349 = vmatpush1.bf16.msra.mxu0 %v305
    %350 = vmatprep.subr.bf16.mxu0 0
    %351 = vmatpush1.bf16.msra.mxu0 %v304
    %352 = vmatprep.subr.bf16.mxu0 0
    %353 = vmatpush2.bf16.msra.mxu0 %v319
    %354 = vmatprep.subr.bf16.mxu0 0
    %355 = vmatpush2.bf16.msra.mxu0 %v318
    %356 = vmatprep.subr.bf16.mxu0 0
    %357 = vmatpush2.bf16.msra.mxu0 %v317
    %358 = vmatprep.subr.bf16.mxu0 0
    %359 = vmatpush2.bf16.msra.mxu0 %v316
    %360 = vmatprep.subr.bf16.mxu0 0
    %361 = vmatpush2.bf16.msra.mxu0 %v315
    %362 = vmatprep.subr.bf16.mxu0 0
    %363 = vmatpush2.bf16.msra.mxu0 %v314
    %364 = vmatprep.subr.bf16.mxu0 0
    %365 = vmatpush2.bf16.msra.mxu0 %v313
    %366 = vmatprep.subr.bf16.mxu0 0
    %367 = vmatpush2.bf16.msra.mxu0 %v312
    %368 = vmatprep.mubr.bf16.mxu0 %v177
    %369 = vmatmul.mubr.bf16.gmra.mxu0 %v176
    %v370 = vpop.f32.mrf.mxu0
    %v371 = vadd.f32 0.0, %v370
    %v372 = vpop.f32.mrf.mxu0
    %v373 = vpop.f32.mrf.mxu0
    %v374 = vadd.f32 0.0, %v373
    %v375 = vpop.f32.mrf.mxu0
    %376 = vmatprep.mubr.bf16.mxu0 %v179
    %377 = vmatmul.mubr.bf16.gmra.mxu0 %v178
    %v378 = vpop.f32.mrf.mxu0
    %v379 = vadd.f32 0.0, %v378
    %v380 = vpop.f32.mrf.mxu0
    %v381 = vpop.f32.mrf.mxu0
    %v382 = vadd.f32 0.0, %v381
    %v383 = vpop.f32.mrf.mxu0
    %384 = vmatprep.mubr.bf16.mxu0 %v181
    %385 = vmatmul.mubr.bf16.gmra.mxu0 %v180
    %v386 = vpop.f32.mrf.mxu0
    %v387 = vadd.f32 0.0, %v386
    %v388 = vpop.f32.mrf.mxu0
    %v389 = vpop.f32.mrf.mxu0
    %v390 = vadd.f32 0.0, %v389
    %v391 = vpop.f32.mrf.mxu0
    %392 = vmatprep.mubr.bf16.mxu0 %v183
    %393 = vmatmul.mubr.bf16.gmra.mxu0 %v182
    %v394 = vpop.f32.mrf.mxu0
    %v395 = vadd.f32 0.0, %v394
    %v396 = vpop.f32.mrf.mxu0
    %v397 = vpop.f32.mrf.mxu0
    %v398 = vadd.f32 0.0, %v397
    %v399 = vpop.f32.mrf.mxu0
    %400 = vmatprep.mubr.bf16.mxu0 %v185
    %401 = vmatmul.mubr.bf16.gmra.mxu0 %v184
    %v402 = vpop.f32.mrf.mxu0
    %v403 = vadd.f32 0.0, %v402
    %v404 = vpop.f32.mrf.mxu0
    %v405 = vpop.f32.mrf.mxu0
    %v406 = vadd.f32 0.0, %v405
    %v407 = vpop.f32.mrf.mxu0
    %408 = vmatprep.mubr.bf16.mxu0 %v187
    %409 = vmatmul.mubr.bf16.gmra.mxu0 %v186
    %v410 = vpop.f32.mrf.mxu0
    %v411 = vadd.f32 0.0, %v410
    %v412 = vpop.f32.mrf.mxu0
    %v413 = vpop.f32.mrf.mxu0
    %v414 = vadd.f32 0.0, %v413
    %v415 = vpop.f32.mrf.mxu0
    %416 = vmatprep.mubr.bf16.mxu0 %v189
    %417 = vmatmul.mubr.bf16.gmra.mxu0 %v188
    %v418 = vpop.f32.mrf.mxu0
    %v419 = vadd.f32 0.0, %v418
    %v420 = vpop.f32.mrf.mxu0
    %v421 = vpop.f32.mrf.mxu0
    %v422 = vadd.f32 0.0, %v421
    %v423 = vpop.f32.mrf.mxu0
    %424 = vmatprep.mubr.bf16.mxu0 %v191
    %425 = vmatmul.mubr.bf16.gmra.mxu0 %v190
    %v426 = vpop.f32.mrf.mxu0
    %v427 = vadd.f32 0.0, %v426
    %v428 = vpop.f32.mrf.mxu0
    %v429 = vpop.f32.mrf.mxu0
    %v430 = vadd.f32 0.0, %v429
    %v431 = vpop.f32.mrf.mxu0
    %432 = vmatprep.mubr.bf16.mxu0 %v193
    %433 = vmatmul.mubr.bf16.gmra.mxu0 %v192
    %v434 = vpop.f32.mrf.mxu0
    %v435 = vadd.f32 0.0, %v434
    %v436 = vpop.f32.mrf.mxu0
    %v437 = vpop.f32.mrf.mxu0
    %v438 = vadd.f32 0.0, %v437
    %v439 = vpop.f32.mrf.mxu0
    %440 = vmatprep.mubr.bf16.mxu0 %v195
    %441 = vmatmul.mubr.bf16.gmra.mxu0 %v194
    %v442 = vpop.f32.mrf.mxu0
    %v443 = vadd.f32 0.0, %v442
    %v444 = vpop.f32.mrf.mxu0
    %v445 = vpop.f32.mrf.mxu0
    %v446 = vadd.f32 0.0, %v445
    %v447 = vpop.f32.mrf.mxu0
    %448 = vmatprep.mubr.bf16.mxu0 %v197
    %449 = vmatmul.mubr.bf16.gmra.mxu0 %v196
    %v450 = vpop.f32.mrf.mxu0
    %v451 = vadd.f32 0.0, %v450
    %v452 = vpop.f32.mrf.mxu0
    %v453 = vpop.f32.mrf.mxu0
    %v454 = vadd.f32 0.0, %v453
    %v455 = vpop.f32.mrf.mxu0
    %456 = vmatprep.mubr.bf16.mxu0 %v199
    %457 = vmatmul.mubr.bf16.gmra.mxu0 %v198
    %v458 = vpop.f32.mrf.mxu0
    %v459 = vadd.f32 0.0, %v458
    %v460 = vpop.f32.mrf.mxu0
    %v461 = vpop.f32.mrf.mxu0
    %v462 = vadd.f32 0.0, %v461
    %v463 = vpop.f32.mrf.mxu0
    %464 = vmatprep.mubr.bf16.mxu0 %v201
    %465 = vmatmul.mubr.bf16.gmra.mxu0 %v200
    %v466 = vpop.f32.mrf.mxu0
    %v467 = vadd.f32 0.0, %v466
    %v468 = vpop.f32.mrf.mxu0
    %v469 = vpop.f32.mrf.mxu0
    %v470 = vadd.f32 0.0, %v469
    %v471 = vpop.f32.mrf.mxu0
    %472 = vmatprep.mubr.bf16.mxu0 %v203
    %473 = vmatmul.mubr.bf16.gmra.mxu0 %v202
    %v474 = vpop.f32.mrf.mxu0
    %v475 = vadd.f32 0.0, %v474
    %v476 = vpop.f32.mrf.mxu0
    %v477 = vpop.f32.mrf.mxu0
    %v478 = vadd.f32 0.0, %v477
    %v479 = vpop.f32.mrf.mxu0
    %480 = vmatprep.mubr.bf16.mxu0 %v205
    %481 = vmatmul.mubr.bf16.gmra.mxu0 %v204
    %v482 = vpop.f32.mrf.mxu0
    %v483 = vadd.f32 0.0, %v482
    %v484 = vpop.f32.mrf.mxu0
    %v485 = vpop.f32.mrf.mxu0
    %v486 = vadd.f32 0.0, %v485
    %v487 = vpop.f32.mrf.mxu0
    %488 = vmatprep.mubr.bf16.mxu0 %v207
    %489 = vmatmul.mubr.bf16.gmra.mxu0 %v206
    %v490 = vpop.f32.mrf.mxu0
    %v491 = vadd.f32 0.0, %v490
    %v492 = vpop.f32.mrf.mxu0
    %v493 = vpop.f32.mrf.mxu0
    %v494 = vadd.f32 0.0, %v493
    %v495 = vpop.f32.mrf.mxu0
    %496 = vdwg.mxu0
    %v497 = vpack.c.bf16 %v374, %v371
    %v498 = vpack.c.bf16 %v382, %v379
    %v499 = vpack.c.bf16 %v390, %v387
    %v500 = vpack.c.bf16 %v398, %v395
    %v501 = vpack.c.bf16 %v406, %v403
    %v502 = vpack.c.bf16 %v414, %v411
    %v503 = vpack.c.bf16 %v422, %v419
    %v504 = vpack.c.bf16 %v430, %v427
    %v505 = vpack.c.bf16 %v438, %v435
    %v506 = vpack.c.bf16 %v446, %v443
    %v507 = vpack.c.bf16 %v454, %v451
    %v508 = vpack.c.bf16 %v462, %v459
    %v509 = vpack.c.bf16 %v470, %v467
    %v510 = vpack.c.bf16 %v478, %v475
    %v511 = vpack.c.bf16 %v486, %v483
    %v512 = vpack.c.bf16 %v494, %v491
    %513 = vst [vmem:[#allocation2] sm:$0xff] 0.0
    %514 = vst [vmem:[#allocation2 + $0x108] sm:$0xff] 0.0
    %515 = vst [vmem:[#allocation2 + $0x8] sm:$0xff] %v371
    %516 = vst [vmem:[#allocation2 + $0x10] sm:$0xff] %v374
    %517 = vst [vmem:[#allocation2 + $0x18] sm:$0xff] %v379
    %518 = vst [vmem:[#allocation2 + $0x20] sm:$0xff] %v382
    %519 = vst [vmem:[#allocation2 + $0x28] sm:$0xff] %v387
    %520 = vst [vmem:[#allocation2 + $0x30] sm:$0xff] %v390
    %521 = vst [vmem:[#allocation2 + $0x38] sm:$0xff] %v395
    %522 = vst [vmem:[#allocation2 + $0x40] sm:$0xff] %v398
    %523 = vst [vmem:[#allocation2 + $0x48] sm:$0xff] %v403
    %524 = vst [vmem:[#allocation2 + $0x50] sm:$0xff] %v406
    %525 = vst [vmem:[#allocation2 + $0x58] sm:$0xff] %v411
    %526 = vst [vmem:[#allocation2 + $0x60] sm:$0xff] %v414
    %527 = vst [vmem:[#allocation2 + $0x68] sm:$0xff] %v419
    %528 = vst [vmem:[#allocation2 + $0x70] sm:$0xff] %v422
    %529 = vst [vmem:[#allocation2 + $0x78] sm:$0xff] %v427
    %530 = vst [vmem:[#allocation2 + $0x80] sm:$0xff] %v430
    %531 = vst [vmem:[#allocation2 + $0x88] sm:$0xff] %v435
    %532 = vst [vmem:[#allocation2 + $0x90] sm:$0xff] %v438
    %533 = vst [vmem:[#allocation2 + $0x98] sm:$0xff] %v443
    %534 = vst [vmem:[#allocation2 + $0xa0] sm:$0xff] %v446
    %535 = vst [vmem:[#allocation2 + $0xa8] sm:$0xff] %v451
    %536 = vst [vmem:[#allocation2 + $0xb0] sm:$0xff] %v454
    %537 = vst [vmem:[#allocation2 + $0xb8] sm:$0xff] %v459
    %538 = vst [vmem:[#allocation2 + $0xc0] sm:$0xff] %v462
    %539 = vst [vmem:[#allocation2 + $0xc8] sm:$0xff] %v467
    %540 = vst [vmem:[#allocation2 + $0xd0] sm:$0xff] %v470
    %541 = vst [vmem:[#allocation2 + $0xd8] sm:$0xff] %v475
    %542 = vst [vmem:[#allocation2 + $0xe0] sm:$0xff] %v478
    %543 = vst [vmem:[#allocation2 + $0xe8] sm:$0xff] %v483
    %544 = vst [vmem:[#allocation2 + $0xf0] sm:$0xff] %v486
    %545 = vst [vmem:[#allocation2 + $0xf8] sm:$0xff] %v491
    %546 = vst [vmem:[#allocation2 + $0x100] sm:$0xff] %v494
    %v547 = vld [vmem:[%s2 + $0x80] sm:$0xf]
    %v548 = vld [vmem:[%s2 + $0x84] sm:$0xf]
    %v549 = vld [vmem:[%s2 + $0x88] sm:$0xf]
    %v550 = vld [vmem:[%s2 + $0x8c] sm:$0xf]
    %v551 = vld [vmem:[%s2 + $0x90] sm:$0xf]
    %v552 = vld [vmem:[%s2 + $0x94] sm:$0xf]
    %v553 = vld [vmem:[%s2 + $0x98] sm:$0xf]
    %v554 = vld [vmem:[%s2 + $0x9c] sm:$0xf]
    %v555 = vld [vmem:[%s2 + $0xa0] sm:$0xf]
    %v556 = vld [vmem:[%s2 + $0xa4] sm:$0xf]
    %v557 = vld [vmem:[%s2 + $0xa8] sm:$0xf]
    %v558 = vld [vmem:[%s2 + $0xac] sm:$0xf]
    %v559 = vld [vmem:[%s2 + $0xb0] sm:$0xf]
    %v560 = vld [vmem:[%s2 + $0xb4] sm:$0xf]
    %v561 = vld [vmem:[%s2 + $0xb8] sm:$0xf]
    %v562 = vld [vmem:[%s2 + $0xbc] sm:$0xf]
    %v563 = vld [vmem:[#allocation2 + $0x6] sm:$0xff]
    %v564 = vld [vmem:[#allocation2 + $0xe] sm:$0xff]
    %v565 = vld [vmem:[#allocation2 + $0x16] sm:$0xff]
    %v566 = vld [vmem:[#allocation2 + $0x1e] sm:$0xff]
    %v567 = vld [vmem:[#allocation2 + $0x26] sm:$0xff]
    %v568 = vld [vmem:[#allocation2 + $0x2e] sm:$0xff]
    %v569 = vld [vmem:[#allocation2 + $0x36] sm:$0xff]
    %v570 = vld [vmem:[#allocation2 + $0x3e] sm:$0xff]
    %v571 = vld [vmem:[#allocation2 + $0x46] sm:$0xff]
    %v572 = vld [vmem:[#allocation2 + $0x4e] sm:$0xff]
    %v573 = vld [vmem:[#allocation2 + $0x56] sm:$0xff]
    %v574 = vld [vmem:[#allocation2 + $0x5e] sm:$0xff]
    %v575 = vld [vmem:[#allocation2 + $0x66] sm:$0xff]
    %v576 = vld [vmem:[#allocation2 + $0x6e] sm:$0xff]
    %v577 = vld [vmem:[#allocation2 + $0x76] sm:$0xff]
    %v578 = vld [vmem:[#allocation2 + $0x7e] sm:$0xff]
    %v579 = vld [vmem:[#allocation2 + $0x86] sm:$0xff]
    %v580 = vld [vmem:[#allocation2 + $0x8e] sm:$0xff]
    %v581 = vld [vmem:[#allocation2 + $0x96] sm:$0xff]
    %v582 = vld [vmem:[#allocation2 + $0x9e] sm:$0xff]
    %v583 = vld [vmem:[#allocation2 + $0xa6] sm:$0xff]
    %v584 = vld [vmem:[#allocation2 + $0xae] sm:$0xff]
    %v585 = vld [vmem:[#allocation2 + $0xb6] sm:$0xff]
    %v586 = vld [vmem:[#allocation2 + $0xbe] sm:$0xff]
    %v587 = vld [vmem:[#allocation2 + $0xc6] sm:$0xff]
    %v588 = vld [vmem:[#allocation2 + $0xce] sm:$0xff]
    %v589 = vld [vmem:[#allocation2 + $0xd6] sm:$0xff]
    %v590 = vld [vmem:[#allocation2 + $0xde] sm:$0xff]
    %v591 = vld [vmem:[#allocation2 + $0xe6] sm:$0xff]
    %v592 = vld [vmem:[#allocation2 + $0xee] sm:$0xff]
    %v593 = vld [vmem:[#allocation2 + $0xf6] sm:$0xff]
    %v594 = vld [vmem:[#allocation2 + $0xfe] sm:$0xff]
    %v595 = vpack.c.bf16 %v564, %v563
    %v596 = vpack.c.bf16 %v566, %v565
    %v597 = vpack.c.bf16 %v568, %v567
    %v598 = vpack.c.bf16 %v570, %v569
    %v599 = vpack.c.bf16 %v572, %v571
    %v600 = vpack.c.bf16 %v574, %v573
    %v601 = vpack.c.bf16 %v576, %v575
    %v602 = vpack.c.bf16 %v578, %v577
    %v603 = vpack.c.bf16 %v580, %v579
    %v604 = vpack.c.bf16 %v582, %v581
    %v605 = vpack.c.bf16 %v584, %v583
    %v606 = vpack.c.bf16 %v586, %v585
    %v607 = vpack.c.bf16 %v588, %v587
    %v608 = vpack.c.bf16 %v590, %v589
    %v609 = vpack.c.bf16 %v592, %v591
    %v610 = vpack.c.bf16 %v594, %v593
    %v611 = vld [vmem:[%s2] sm:$0xf]
    %v612 = vld [vmem:[%s2 + $0x4] sm:$0xf]
    %v613 = vld [vmem:[%s2 + $0x8] sm:$0xf]
    %v614 = vld [vmem:[%s2 + $0xc] sm:$0xf]
    %v615 = vld [vmem:[%s2 + $0x10] sm:$0xf]
    %v616 = vld [vmem:[%s2 + $0x14] sm:$0xf]
    %v617 = vld [vmem:[%s2 + $0x18] sm:$0xf]
    %v618 = vld [vmem:[%s2 + $0x1c] sm:$0xf]
    %v619 = vld [vmem:[%s2 + $0x20] sm:$0xf]
    %v620 = vld [vmem:[%s2 + $0x24] sm:$0xf]
    %v621 = vld [vmem:[%s2 + $0x28] sm:$0xf]
    %v622 = vld [vmem:[%s2 + $0x2c] sm:$0xf]
    %v623 = vld [vmem:[%s2 + $0x30] sm:$0xf]
    %v624 = vld [vmem:[%s2 + $0x34] sm:$0xf]
    %v625 = vld [vmem:[%s2 + $0x38] sm:$0xf]
    %v626 = vld [vmem:[%s2 + $0x3c] sm:$0xf]
    %v643 = vunpack.c.l.b16 %v611
    %v644 = vunpack.c.l.b16 %v612
    %v645 = vunpack.c.l.b16 %v613
    %v646 = vunpack.c.l.b16 %v614
    %v647 = vunpack.c.l.b16 %v615
    %v648 = vunpack.c.l.b16 %v616
    %v649 = vunpack.c.l.b16 %v617
    %v650 = vunpack.c.l.b16 %v618
    %v651 = vunpack.c.l.b16 %v619
    %v652 = vunpack.c.l.b16 %v620
    %v653 = vunpack.c.l.b16 %v621
    %v654 = vunpack.c.l.b16 %v622
    %v655 = vunpack.c.l.b16 %v623
    %v656 = vunpack.c.l.b16 %v624
    %v657 = vunpack.c.l.b16 %v625
    %v658 = vunpack.c.l.b16 %v626
    %v659 = vpack.c.b16 %v644, %v643
    %v660 = vpack.c.b16 %v646, %v645
    %v661 = vpack.c.b16 %v648, %v647
    %v662 = vpack.c.b16 %v650, %v649
    %v663 = vpack.c.b16 %v652, %v651
    %v664 = vpack.c.b16 %v654, %v653
    %v665 = vpack.c.b16 %v656, %v655
    %v666 = vpack.c.b16 %v658, %v657
    %675 = vmatprep.subr.bf16.mxu0 0
    %676 = vmatpush1.bf16.msra.mxu0 %v666
    %677 = vmatprep.subr.bf16.mxu0 0
    %678 = vmatpush1.bf16.msra.mxu0 %v665
    %679 = vmatprep.subr.bf16.mxu0 0
    %680 = vmatpush1.bf16.msra.mxu0 %v664
    %681 = vmatprep.subr.bf16.mxu0 0
    %682 = vmatpush1.bf16.msra.mxu0 %v663
    %683 = vmatprep.subr.bf16.mxu0 0
    %684 = vmatpush1.bf16.msra.mxu0 %v662
    %685 = vmatprep.subr.bf16.mxu0 0
    %686 = vmatpush1.bf16.msra.mxu0 %v661
    %687 = vmatprep.subr.bf16.mxu0 0
    %688 = vmatpush1.bf16.msra.mxu0 %v660
    %689 = vmatprep.subr.bf16.mxu0 0
    %690 = vmatpush1.bf16.msra.mxu0 %v659
    %691 = vmatprep.subr.bf16.mxu0 0
    %692 = vmatpush2.bf16.msra.mxu0 0
    %693 = vmatprep.subr.bf16.mxu0 0
    %694 = vmatpush2.bf16.msra.mxu0 0
    %695 = vmatprep.subr.bf16.mxu0 0
    %696 = vmatpush2.bf16.msra.mxu0 0
    %697 = vmatprep.subr.bf16.mxu0 0
    %698 = vmatpush2.bf16.msra.mxu0 0
    %699 = vmatprep.subr.bf16.mxu0 0
    %700 = vmatpush2.bf16.msra.mxu0 0
    %701 = vmatprep.subr.bf16.mxu0 0
    %702 = vmatpush2.bf16.msra.mxu0 0
    %703 = vmatprep.subr.bf16.mxu0 0
    %704 = vmatpush2.bf16.msra.mxu0 0
    %705 = vmatprep.subr.bf16.mxu0 0
    %706 = vmatpush2.bf16.msra.mxu0 0
    %707 = vmatprep.mubr.bf16.mxu0 0
    %708 = vmatmul.mubr.bf16.gmra.mxu0 %v595
    %v709 = vpop.f32.mrf.mxu0
    %v710 = vadd.f32 0.0, %v709
    %v711 = vpop.f32.mrf.mxu0
    %v712 = vpop.f32.mrf.mxu0
    %v713 = vadd.f32 0.0, %v712
    %v714 = vpop.f32.mrf.mxu0
    %715 = vmatprep.mubr.bf16.mxu0 0
    %716 = vmatmul.mubr.bf16.gmra.mxu0 %v596
    %v717 = vpop.f32.mrf.mxu0
    %v718 = vadd.f32 0.0, %v717
    %v719 = vpop.f32.mrf.mxu0
    %v720 = vpop.f32.mrf.mxu0
    %v721 = vadd.f32 0.0, %v720
    %v722 = vpop.f32.mrf.mxu0
    %723 = vmatprep.mubr.bf16.mxu0 0
    %724 = vmatmul.mubr.bf16.gmra.mxu0 %v597
    %v725 = vpop.f32.mrf.mxu0
    %v726 = vadd.f32 0.0, %v725
    %v727 = vpop.f32.mrf.mxu0
    %v728 = vpop.f32.mrf.mxu0
    %v729 = vadd.f32 0.0, %v728
    %v730 = vpop.f32.mrf.mxu0
    %731 = vmatprep.mubr.bf16.mxu0 0
    %732 = vmatmul.mubr.bf16.gmra.mxu0 %v598
    %v733 = vpop.f32.mrf.mxu0
    %v734 = vadd.f32 0.0, %v733
    %v735 = vpop.f32.mrf.mxu0
    %v736 = vpop.f32.mrf.mxu0
    %v737 = vadd.f32 0.0, %v736
    %v738 = vpop.f32.mrf.mxu0
    %739 = vmatprep.mubr.bf16.mxu0 0
    %740 = vmatmul.mubr.bf16.gmra.mxu0 %v599
    %v741 = vpop.f32.mrf.mxu0
    %v742 = vadd.f32 0.0, %v741
    %v743 = vpop.f32.mrf.mxu0
    %v744 = vpop.f32.mrf.mxu0
    %v745 = vadd.f32 0.0, %v744
    %v746 = vpop.f32.mrf.mxu0
    %747 = vmatprep.mubr.bf16.mxu0 0
    %748 = vmatmul.mubr.bf16.gmra.mxu0 %v600
    %v749 = vpop.f32.mrf.mxu0
    %v750 = vadd.f32 0.0, %v749
    %v751 = vpop.f32.mrf.mxu0
    %v752 = vpop.f32.mrf.mxu0
    %v753 = vadd.f32 0.0, %v752
    %v754 = vpop.f32.mrf.mxu0
    %755 = vmatprep.mubr.bf16.mxu0 0
    %756 = vmatmul.mubr.bf16.gmra.mxu0 %v601
    %v757 = vpop.f32.mrf.mxu0
    %v758 = vadd.f32 0.0, %v757
    %v759 = vpop.f32.mrf.mxu0
    %v760 = vpop.f32.mrf.mxu0
    %v761 = vadd.f32 0.0, %v760
    %v762 = vpop.f32.mrf.mxu0
    %763 = vmatprep.mubr.bf16.mxu0 0
    %764 = vmatmul.mubr.bf16.gmra.mxu0 %v602
    %v765 = vpop.f32.mrf.mxu0
    %v766 = vadd.f32 0.0, %v765
    %v767 = vpop.f32.mrf.mxu0
    %v768 = vpop.f32.mrf.mxu0
    %v769 = vadd.f32 0.0, %v768
    %v770 = vpop.f32.mrf.mxu0
    %771 = vmatprep.mubr.bf16.mxu0 0
    %772 = vmatmul.mubr.bf16.gmra.mxu0 %v603
    %v773 = vpop.f32.mrf.mxu0
    %v774 = vadd.f32 0.0, %v773
    %v775 = vpop.f32.mrf.mxu0
    %v776 = vpop.f32.mrf.mxu0
    %v777 = vadd.f32 0.0, %v776
    %v778 = vpop.f32.mrf.mxu0
    %779 = vmatprep.mubr.bf16.mxu0 0
    %780 = vmatmul.mubr.bf16.gmra.mxu0 %v604
    %v781 = vpop.f32.mrf.mxu0
    %v782 = vadd.f32 0.0, %v781
    %v783 = vpop.f32.mrf.mxu0
    %v784 = vpop.f32.mrf.mxu0
    %v785 = vadd.f32 0.0, %v784
    %v786 = vpop.f32.mrf.mxu0
    %787 = vmatprep.mubr.bf16.mxu0 0
    %788 = vmatmul.mubr.bf16.gmra.mxu0 %v605
    %v789 = vpop.f32.mrf.mxu0
    %v790 = vadd.f32 0.0, %v789
    %v791 = vpop.f32.mrf.mxu0
    %v792 = vpop.f32.mrf.mxu0
    %v793 = vadd.f32 0.0, %v792
    %v794 = vpop.f32.mrf.mxu0
    %795 = vmatprep.mubr.bf16.mxu0 0
    %796 = vmatmul.mubr.bf16.gmra.mxu0 %v606
    %v797 = vpop.f32.mrf.mxu0
    %v798 = vadd.f32 0.0, %v797
    %v799 = vpop.f32.mrf.mxu0
    %v800 = vpop.f32.mrf.mxu0
    %v801 = vadd.f32 0.0, %v800
    %v802 = vpop.f32.mrf.mxu0
    %803 = vmatprep.mubr.bf16.mxu0 0
    %804 = vmatmul.mubr.bf16.gmra.mxu0 %v607
    %v805 = vpop.f32.mrf.mxu0
    %v806 = vadd.f32 0.0, %v805
    %v807 = vpop.f32.mrf.mxu0
    %v808 = vpop.f32.mrf.mxu0
    %v809 = vadd.f32 0.0, %v808
    %v810 = vpop.f32.mrf.mxu0
    %811 = vmatprep.mubr.bf16.mxu0 0
    %812 = vmatmul.mubr.bf16.gmra.mxu0 %v608
    %v813 = vpop.f32.mrf.mxu0
    %v814 = vadd.f32 0.0, %v813
    %v815 = vpop.f32.mrf.mxu0
    %v816 = vpop.f32.mrf.mxu0
    %v817 = vadd.f32 0.0, %v816
    %v818 = vpop.f32.mrf.mxu0
    %819 = vmatprep.mubr.bf16.mxu0 0
    %820 = vmatmul.mubr.bf16.gmra.mxu0 %v609
    %v821 = vpop.f32.mrf.mxu0
    %v822 = vadd.f32 0.0, %v821
    %v823 = vpop.f32.mrf.mxu0
    %v824 = vpop.f32.mrf.mxu0
    %v825 = vadd.f32 0.0, %v824
    %v826 = vpop.f32.mrf.mxu0
    %827 = vmatprep.mubr.bf16.mxu0 0
    %828 = vmatmul.mubr.bf16.gmra.mxu0 %v610
    %v829 = vpop.f32.mrf.mxu0
    %v830 = vadd.f32 0.0, %v829
    %v831 = vpop.f32.mrf.mxu0
    %v832 = vpop.f32.mrf.mxu0
    %v833 = vadd.f32 0.0, %v832
    %v834 = vpop.f32.mrf.mxu0
    %835 = vdwg.mxu0
    %v852 = vunpack.c.l.b16 %v547
    %v853 = vunpack.c.l.b16 %v548
    %v854 = vunpack.c.l.b16 %v549
    %v855 = vunpack.c.l.b16 %v550
    %v856 = vunpack.c.l.b16 %v551
    %v857 = vunpack.c.l.b16 %v552
    %v858 = vunpack.c.l.b16 %v553
    %v859 = vunpack.c.l.b16 %v554
    %v860 = vunpack.c.l.b16 %v555
    %v861 = vunpack.c.l.b16 %v556
    %v862 = vunpack.c.l.b16 %v557
    %v863 = vunpack.c.l.b16 %v558
    %v864 = vunpack.c.l.b16 %v559
    %v865 = vunpack.c.l.b16 %v560
    %v866 = vunpack.c.l.b16 %v561
    %v867 = vunpack.c.l.b16 %v562
    %v868 = vpack.c.b16 %v853, %v852
    %v869 = vpack.c.b16 %v855, %v854
    %v870 = vpack.c.b16 %v857, %v856
    %v871 = vpack.c.b16 %v859, %v858
    %v872 = vpack.c.b16 %v861, %v860
    %v873 = vpack.c.b16 %v863, %v862
    %v874 = vpack.c.b16 %v865, %v864
    %v875 = vpack.c.b16 %v867, %v866
    %884 = vmatprep.subr.bf16.mxu0 0
    %885 = vmatpush1.bf16.msra.mxu0 %v875
    %886 = vmatprep.subr.bf16.mxu0 0
    %887 = vmatpush1.bf16.msra.mxu0 %v874
    %888 = vmatprep.subr.bf16.mxu0 0
    %889 = vmatpush1.bf16.msra.mxu0 %v873
    %890 = vmatprep.subr.bf16.mxu0 0
    %891 = vmatpush1.bf16.msra.mxu0 %v872
    %892 = vmatprep.subr.bf16.mxu0 0
    %893 = vmatpush1.bf16.msra.mxu0 %v871
    %894 = vmatprep.subr.bf16.mxu0 0
    %895 = vmatpush1.bf16.msra.mxu0 %v870
    %896 = vmatprep.subr.bf16.mxu0 0
    %897 = vmatpush1.bf16.msra.mxu0 %v869
    %898 = vmatprep.subr.bf16.mxu0 0
    %899 = vmatpush1.bf16.msra.mxu0 %v868
    %900 = vmatprep.subr.bf16.mxu0 0
    %901 = vmatpush2.bf16.msra.mxu0 0
    %902 = vmatprep.subr.bf16.mxu0 0
    %903 = vmatpush2.bf16.msra.mxu0 0
    %904 = vmatprep.subr.bf16.mxu0 0
    %905 = vmatpush2.bf16.msra.mxu0 0
    %906 = vmatprep.subr.bf16.mxu0 0
    %907 = vmatpush2.bf16.msra.mxu0 0
    %908 = vmatprep.subr.bf16.mxu0 0
    %909 = vmatpush2.bf16.msra.mxu0 0
    %910 = vmatprep.subr.bf16.mxu0 0
    %911 = vmatpush2.bf16.msra.mxu0 0
    %912 = vmatprep.subr.bf16.mxu0 0
    %913 = vmatpush2.bf16.msra.mxu0 0
    %914 = vmatprep.subr.bf16.mxu0 0
    %915 = vmatpush2.bf16.msra.mxu0 0
    %916 = vmatprep.mubr.bf16.mxu0 0
    %917 = vmatmul.mubr.bf16.gmra.mxu0 %v497
    %v918 = vpop.f32.mrf.mxu0
    %v919 = vadd.f32 %v710, %v918
    %v920 = vpop.f32.mrf.mxu0
    %v921 = vpop.f32.mrf.mxu0
    %v922 = vadd.f32 %v713, %v921
    %v923 = vpop.f32.mrf.mxu0
    %924 = vmatprep.mubr.bf16.mxu0 0
    %925 = vmatmul.mubr.bf16.gmra.mxu0 %v498
    %v926 = vpop.f32.mrf.mxu0
    %v927 = vadd.f32 %v718, %v926
    %v928 = vpop.f32.mrf.mxu0
    %v929 = vpop.f32.mrf.mxu0
    %v930 = vadd.f32 %v721, %v929
    %v931 = vpop.f32.mrf.mxu0
    %932 = vmatprep.mubr.bf16.mxu0 0
    %933 = vmatmul.mubr.bf16.gmra.mxu0 %v499
    %v934 = vpop.f32.mrf.mxu0
    %v935 = vadd.f32 %v726, %v934
    %v936 = vpop.f32.mrf.mxu0
    %v937 = vpop.f32.mrf.mxu0
    %v938 = vadd.f32 %v729, %v937
    %v939 = vpop.f32.mrf.mxu0
    %940 = vmatprep.mubr.bf16.mxu0 0
    %941 = vmatmul.mubr.bf16.gmra.mxu0 %v500
    %v942 = vpop.f32.mrf.mxu0
    %v943 = vadd.f32 %v734, %v942
    %v944 = vpop.f32.mrf.mxu0
    %v945 = vpop.f32.mrf.mxu0
    %v946 = vadd.f32 %v737, %v945
    %v947 = vpop.f32.mrf.mxu0
    %948 = vmatprep.mubr.bf16.mxu0 0
    %949 = vmatmul.mubr.bf16.gmra.mxu0 %v501
    %v950 = vpop.f32.mrf.mxu0
    %v951 = vadd.f32 %v742, %v950
    %v952 = vpop.f32.mrf.mxu0
    %v953 = vpop.f32.mrf.mxu0
    %v954 = vadd.f32 %v745, %v953
    %v955 = vpop.f32.mrf.mxu0
    %956 = vmatprep.mubr.bf16.mxu0 0
    %957 = vmatmul.mubr.bf16.gmra.mxu0 %v502
    %v958 = vpop.f32.mrf.mxu0
    %v959 = vadd.f32 %v750, %v958
    %v960 = vpop.f32.mrf.mxu0
    %v961 = vpop.f32.mrf.mxu0
    %v962 = vadd.f32 %v753, %v961
    %v963 = vpop.f32.mrf.mxu0
    %964 = vmatprep.mubr.bf16.mxu0 0
    %965 = vmatmul.mubr.bf16.gmra.mxu0 %v503
    %v966 = vpop.f32.mrf.mxu0
    %v967 = vadd.f32 %v758, %v966
    %v968 = vpop.f32.mrf.mxu0
    %v969 = vpop.f32.mrf.mxu0
    %v970 = vadd.f32 %v761, %v969
    %v971 = vpop.f32.mrf.mxu0
    %972 = vmatprep.mubr.bf16.mxu0 0
    %973 = vmatmul.mubr.bf16.gmra.mxu0 %v504
    %v974 = vpop.f32.mrf.mxu0
    %v975 = vadd.f32 %v766, %v974
    %v976 = vpop.f32.mrf.mxu0
    %v977 = vpop.f32.mrf.mxu0
    %v978 = vadd.f32 %v769, %v977
    %v979 = vpop.f32.mrf.mxu0
    %980 = vmatprep.mubr.bf16.mxu0 0
    %981 = vmatmul.mubr.bf16.gmra.mxu0 %v505
    %v982 = vpop.f32.mrf.mxu0
    %v983 = vadd.f32 %v774, %v982
    %v984 = vpop.f32.mrf.mxu0
    %v985 = vpop.f32.mrf.mxu0
    %v986 = vadd.f32 %v777, %v985
    %v987 = vpop.f32.mrf.mxu0
    %988 = vmatprep.mubr.bf16.mxu0 0
    %989 = vmatmul.mubr.bf16.gmra.mxu0 %v506
    %v990 = vpop.f32.mrf.mxu0
    %v991 = vadd.f32 %v782, %v990
    %v992 = vpop.f32.mrf.mxu0
    %v993 = vpop.f32.mrf.mxu0
    %v994 = vadd.f32 %v785, %v993
    %v995 = vpop.f32.mrf.mxu0
    %996 = vmatprep.mubr.bf16.mxu0 0
    %997 = vmatmul.mubr.bf16.gmra.mxu0 %v507
    %v998 = vpop.f32.mrf.mxu0
    %v999 = vadd.f32 %v790, %v998
    %v1000 = vpop.f32.mrf.mxu0
    %v1001 = vpop.f32.mrf.mxu0
    %v1002 = vadd.f32 %v793, %v1001
    %v1003 = vpop.f32.mrf.mxu0
    %1004 = vmatprep.mubr.bf16.mxu0 0
    %1005 = vmatmul.mubr.bf16.gmra.mxu0 %v508
    %v1006 = vpop.f32.mrf.mxu0
    %v1007 = vadd.f32 %v798, %v1006
    %v1008 = vpop.f32.mrf.mxu0
    %v1009 = vpop.f32.mrf.mxu0
    %v1010 = vadd.f32 %v801, %v1009
    %v1011 = vpop.f32.mrf.mxu0
    %1012 = vmatprep.mubr.bf16.mxu0 0
    %1013 = vmatmul.mubr.bf16.gmra.mxu0 %v509
    %v1014 = vpop.f32.mrf.mxu0
    %v1015 = vadd.f32 %v806, %v1014
    %v1016 = vpop.f32.mrf.mxu0
    %v1017 = vpop.f32.mrf.mxu0
    %v1018 = vadd.f32 %v809, %v1017
    %v1019 = vpop.f32.mrf.mxu0
    %1020 = vmatprep.mubr.bf16.mxu0 0
    %1021 = vmatmul.mubr.bf16.gmra.mxu0 %v510
    %v1022 = vpop.f32.mrf.mxu0
    %v1023 = vadd.f32 %v814, %v1022
    %v1024 = vpop.f32.mrf.mxu0
    %v1025 = vpop.f32.mrf.mxu0
    %v1026 = vadd.f32 %v817, %v1025
    %v1027 = vpop.f32.mrf.mxu0
    %1028 = vmatprep.mubr.bf16.mxu0 0
    %1029 = vmatmul.mubr.bf16.gmra.mxu0 %v511
    %v1030 = vpop.f32.mrf.mxu0
    %v1031 = vadd.f32 %v822, %v1030
    %v1032 = vpop.f32.mrf.mxu0
    %v1033 = vpop.f32.mrf.mxu0
    %v1034 = vadd.f32 %v825, %v1033
    %v1035 = vpop.f32.mrf.mxu0
    %1036 = vmatprep.mubr.bf16.mxu0 0
    %1037 = vmatmul.mubr.bf16.gmra.mxu0 %v512
    %v1038 = vpop.f32.mrf.mxu0
    %v1039 = vadd.f32 %v830, %v1038
    %v1040 = vpop.f32.mrf.mxu0
    %v1041 = vpop.f32.mrf.mxu0
    %v1042 = vadd.f32 %v833, %v1041
    %v1043 = vpop.f32.mrf.mxu0
    %1044 = vdwg.mxu0
    %v1045 = vld [vmem:[#allocation2 + $0x7] sm:$0xff]
    %v1046 = vld [vmem:[#allocation2 + $0xf] sm:$0xff]
    %v1047 = vld [vmem:[#allocation2 + $0x17] sm:$0xff]
    %v1048 = vld [vmem:[#allocation2 + $0x1f] sm:$0xff]
    %v1049 = vld [vmem:[#allocation2 + $0x27] sm:$0xff]
    %v1050 = vld [vmem:[#allocation2 + $0x2f] sm:$0xff]
    %v1051 = vld [vmem:[#allocation2 + $0x37] sm:$0xff]
    %v1052 = vld [vmem:[#allocation2 + $0x3f] sm:$0xff]
    %v1053 = vld [vmem:[#allocation2 + $0x47] sm:$0xff]
    %v1054 = vld [vmem:[#allocation2 + $0x4f] sm:$0xff]
    %v1055 = vld [vmem:[#allocation2 + $0x57] sm:$0xff]
    %v1056 = vld [vmem:[#allocation2 + $0x5f] sm:$0xff]
    %v1057 = vld [vmem:[#allocation2 + $0x67] sm:$0xff]
    %v1058 = vld [vmem:[#allocation2 + $0x6f] sm:$0xff]
    %v1059 = vld [vmem:[#allocation2 + $0x77] sm:$0xff]
    %v1060 = vld [vmem:[#allocation2 + $0x7f] sm:$0xff]
    %v1061 = vld [vmem:[#allocation2 + $0x87] sm:$0xff]
    %v1062 = vld [vmem:[#allocation2 + $0x8f] sm:$0xff]
    %v1063 = vld [vmem:[#allocation2 + $0x97] sm:$0xff]
    %v1064 = vld [vmem:[#allocation2 + $0x9f] sm:$0xff]
    %v1065 = vld [vmem:[#allocation2 + $0xa7] sm:$0xff]
    %v1066 = vld [vmem:[#allocation2 + $0xaf] sm:$0xff]
    %v1067 = vld [vmem:[#allocation2 + $0xb7] sm:$0xff]
    %v1068 = vld [vmem:[#allocation2 + $0xbf] sm:$0xff]
    %v1069 = vld [vmem:[#allocation2 + $0xc7] sm:$0xff]
    %v1070 = vld [vmem:[#allocation2 + $0xcf] sm:$0xff]
    %v1071 = vld [vmem:[#allocation2 + $0xd7] sm:$0xff]
    %v1072 = vld [vmem:[#allocation2 + $0xdf] sm:$0xff]
    %v1073 = vld [vmem:[#allocation2 + $0xe7] sm:$0xff]
    %v1074 = vld [vmem:[#allocation2 + $0xef] sm:$0xff]
    %v1075 = vld [vmem:[#allocation2 + $0xf7] sm:$0xff]
    %v1076 = vld [vmem:[#allocation2 + $0xff] sm:$0xff]
    %v1077 = vpack.c.bf16 %v1046, %v1045
    %v1078 = vpack.c.bf16 %v1048, %v1047
    %v1079 = vpack.c.bf16 %v1050, %v1049
    %v1080 = vpack.c.bf16 %v1052, %v1051
    %v1081 = vpack.c.bf16 %v1054, %v1053
    %v1082 = vpack.c.bf16 %v1056, %v1055
    %v1083 = vpack.c.bf16 %v1058, %v1057
    %v1084 = vpack.c.bf16 %v1060, %v1059
    %v1085 = vpack.c.bf16 %v1062, %v1061
    %v1086 = vpack.c.bf16 %v1064, %v1063
    %v1087 = vpack.c.bf16 %v1066, %v1065
    %v1088 = vpack.c.bf16 %v1068, %v1067
    %v1089 = vpack.c.bf16 %v1070, %v1069
    %v1090 = vpack.c.bf16 %v1072, %v1071
    %v1091 = vpack.c.bf16 %v1074, %v1073
    %v1092 = vpack.c.bf16 %v1076, %v1075
    %v1093 = vld [vmem:[%s2 + $0x40] sm:$0xf]
    %v1094 = vld [vmem:[%s2 + $0x44] sm:$0xf]
    %v1095 = vld [vmem:[%s2 + $0x48] sm:$0xf]
    %v1096 = vld [vmem:[%s2 + $0x4c] sm:$0xf]
    %v1097 = vld [vmem:[%s2 + $0x50] sm:$0xf]
    %v1098 = vld [vmem:[%s2 + $0x54] sm:$0xf]
    %v1099 = vld [vmem:[%s2 + $0x58] sm:$0xf]
    %v1100 = vld [vmem:[%s2 + $0x5c] sm:$0xf]
    %v1101 = vld [vmem:[%s2 + $0x60] sm:$0xf]
    %v1102 = vld [vmem:[%s2 + $0x64] sm:$0xf]
    %v1103 = vld [vmem:[%s2 + $0x68] sm:$0xf]
    %v1104 = vld [vmem:[%s2 + $0x6c] sm:$0xf]
    %v1105 = vld [vmem:[%s2 + $0x70] sm:$0xf]
    %v1106 = vld [vmem:[%s2 + $0x74] sm:$0xf]
    %v1107 = vld [vmem:[%s2 + $0x78] sm:$0xf]
    %v1108 = vld [vmem:[%s2 + $0x7c] sm:$0xf]
    %v1125 = vunpack.c.l.b16 %v1093
    %v1126 = vunpack.c.l.b16 %v1094
    %v1127 = vunpack.c.l.b16 %v1095
    %v1128 = vunpack.c.l.b16 %v1096
    %v1129 = vunpack.c.l.b16 %v1097
    %v1130 = vunpack.c.l.b16 %v1098
    %v1131 = vunpack.c.l.b16 %v1099
    %v1132 = vunpack.c.l.b16 %v1100
    %v1133 = vunpack.c.l.b16 %v1101
    %v1134 = vunpack.c.l.b16 %v1102
    %v1135 = vunpack.c.l.b16 %v1103
    %v1136 = vunpack.c.l.b16 %v1104
    %v1137 = vunpack.c.l.b16 %v1105
    %v1138 = vunpack.c.l.b16 %v1106
    %v1139 = vunpack.c.l.b16 %v1107
    %v1140 = vunpack.c.l.b16 %v1108
    %v1141 = vpack.c.b16 %v1126, %v1125
    %v1142 = vpack.c.b16 %v1128, %v1127
    %v1143 = vpack.c.b16 %v1130, %v1129
    %v1144 = vpack.c.b16 %v1132, %v1131
    %v1145 = vpack.c.b16 %v1134, %v1133
    %v1146 = vpack.c.b16 %v1136, %v1135
    %v1147 = vpack.c.b16 %v1138, %v1137
    %v1148 = vpack.c.b16 %v1140, %v1139
    %1157 = vmatprep.subr.bf16.mxu0 0
    %1158 = vmatpush1.bf16.msra.mxu0 %v1148
    %1159 = vmatprep.subr.bf16.mxu0 0
    %1160 = vmatpush1.bf16.msra.mxu0 %v1147
    %1161 = vmatprep.subr.bf16.mxu0 0
    %1162 = vmatpush1.bf16.msra.mxu0 %v1146
    %1163 = vmatprep.subr.bf16.mxu0 0
    %1164 = vmatpush1.bf16.msra.mxu0 %v1145
    %1165 = vmatprep.subr.bf16.mxu0 0
    %1166 = vmatpush1.bf16.msra.mxu0 %v1144
    %1167 = vmatprep.subr.bf16.mxu0 0
    %1168 = vmatpush1.bf16.msra.mxu0 %v1143
    %1169 = vmatprep.subr.bf16.mxu0 0
    %1170 = vmatpush1.bf16.msra.mxu0 %v1142
    %1171 = vmatprep.subr.bf16.mxu0 0
    %1172 = vmatpush1.bf16.msra.mxu0 %v1141
    %1173 = vmatprep.subr.bf16.mxu0 0
    %1174 = vmatpush2.bf16.msra.mxu0 0
    %1175 = vmatprep.subr.bf16.mxu0 0
    %1176 = vmatpush2.bf16.msra.mxu0 0
    %1177 = vmatprep.subr.bf16.mxu0 0
    %1178 = vmatpush2.bf16.msra.mxu0 0
    %1179 = vmatprep.subr.bf16.mxu0 0
    %1180 = vmatpush2.bf16.msra.mxu0 0
    %1181 = vmatprep.subr.bf16.mxu0 0
    %1182 = vmatpush2.bf16.msra.mxu0 0
    %1183 = vmatprep.subr.bf16.mxu0 0
    %1184 = vmatpush2.bf16.msra.mxu0 0
    %1185 = vmatprep.subr.bf16.mxu0 0
    %1186 = vmatpush2.bf16.msra.mxu0 0
    %1187 = vmatprep.subr.bf16.mxu0 0
    %1188 = vmatpush2.bf16.msra.mxu0 0
    %1189 = vmatprep.mubr.bf16.mxu0 0
    %1190 = vmatmul.mubr.bf16.gmra.mxu0 %v1077
    %v1191 = vpop.f32.mrf.mxu0
    %v1192 = vadd.f32 0.0, %v1191
    %v1193 = vpop.f32.mrf.mxu0
    %v1194 = vpop.f32.mrf.mxu0
    %v1195 = vadd.f32 0.0, %v1194
    %v1196 = vpop.f32.mrf.mxu0
    %1197 = vmatprep.mubr.bf16.mxu0 0
    %1198 = vmatmul.mubr.bf16.gmra.mxu0 %v1078
    %v1199 = vpop.f32.mrf.mxu0
    %v1200 = vadd.f32 0.0, %v1199
    %v1201 = vpop.f32.mrf.mxu0
    %v1202 = vpop.f32.mrf.mxu0
    %v1203 = vadd.f32 0.0, %v1202
    %v1204 = vpop.f32.mrf.mxu0
    %1205 = vmatprep.mubr.bf16.mxu0 0
    %1206 = vmatmul.mubr.bf16.gmra.mxu0 %v1079
    %v1207 = vpop.f32.mrf.mxu0
    %v1208 = vadd.f32 0.0, %v1207
    %v1209 = vpop.f32.mrf.mxu0
    %v1210 = vpop.f32.mrf.mxu0
    %v1211 = vadd.f32 0.0, %v1210
    %v1212 = vpop.f32.mrf.mxu0
    %1213 = vmatprep.mubr.bf16.mxu0 0
    %1214 = vmatmul.mubr.bf16.gmra.mxu0 %v1080
    %v1215 = vpop.f32.mrf.mxu0
    %v1216 = vadd.f32 0.0, %v1215
    %v1217 = vpop.f32.mrf.mxu0
    %v1218 = vpop.f32.mrf.mxu0
    %v1219 = vadd.f32 0.0, %v1218
    %v1220 = vpop.f32.mrf.mxu0
    %1221 = vmatprep.mubr.bf16.mxu0 0
    %1222 = vmatmul.mubr.bf16.gmra.mxu0 %v1081
    %v1223 = vpop.f32.mrf.mxu0
    %v1224 = vadd.f32 0.0, %v1223
    %v1225 = vpop.f32.mrf.mxu0
    %v1226 = vpop.f32.mrf.mxu0
    %v1227 = vadd.f32 0.0, %v1226
    %v1228 = vpop.f32.mrf.mxu0
    %1229 = vmatprep.mubr.bf16.mxu0 0
    %1230 = vmatmul.mubr.bf16.gmra.mxu0 %v1082
    %v1231 = vpop.f32.mrf.mxu0
    %v1232 = vadd.f32 0.0, %v1231
    %v1233 = vpop.f32.mrf.mxu0
    %v1234 = vpop.f32.mrf.mxu0
    %v1235 = vadd.f32 0.0, %v1234
    %v1236 = vpop.f32.mrf.mxu0
    %1237 = vmatprep.mubr.bf16.mxu0 0
    %1238 = vmatmul.mubr.bf16.gmra.mxu0 %v1083
    %v1239 = vpop.f32.mrf.mxu0
    %v1240 = vadd.f32 0.0, %v1239
    %v1241 = vpop.f32.mrf.mxu0
    %v1242 = vpop.f32.mrf.mxu0
    %v1243 = vadd.f32 0.0, %v1242
    %v1244 = vpop.f32.mrf.mxu0
    %1245 = vmatprep.mubr.bf16.mxu0 0
    %1246 = vmatmul.mubr.bf16.gmra.mxu0 %v1084
    %v1247 = vpop.f32.mrf.mxu0
    %v1248 = vadd.f32 0.0, %v1247
    %v1249 = vpop.f32.mrf.mxu0
    %v1250 = vpop.f32.mrf.mxu0
    %v1251 = vadd.f32 0.0, %v1250
    %v1252 = vpop.f32.mrf.mxu0
    %1253 = vmatprep.mubr.bf16.mxu0 0
    %1254 = vmatmul.mubr.bf16.gmra.mxu0 %v1085
    %v1255 = vpop.f32.mrf.mxu0
    %v1256 = vadd.f32 0.0, %v1255
    %v1257 = vpop.f32.mrf.mxu0
    %v1258 = vpop.f32.mrf.mxu0
    %v1259 = vadd.f32 0.0, %v1258
    %v1260 = vpop.f32.mrf.mxu0
    %1261 = vmatprep.mubr.bf16.mxu0 0
    %1262 = vmatmul.mubr.bf16.gmra.mxu0 %v1086
    %v1263 = vpop.f32.mrf.mxu0
    %v1264 = vadd.f32 0.0, %v1263
    %v1265 = vpop.f32.mrf.mxu0
    %v1266 = vpop.f32.mrf.mxu0
    %v1267 = vadd.f32 0.0, %v1266
    %v1268 = vpop.f32.mrf.mxu0
    %1269 = vmatprep.mubr.bf16.mxu0 0
    %1270 = vmatmul.mubr.bf16.gmra.mxu0 %v1087
    %v1271 = vpop.f32.mrf.mxu0
    %v1272 = vadd.f32 0.0, %v1271
    %v1273 = vpop.f32.mrf.mxu0
    %v1274 = vpop.f32.mrf.mxu0
    %v1275 = vadd.f32 0.0, %v1274
    %v1276 = vpop.f32.mrf.mxu0
    %1277 = vmatprep.mubr.bf16.mxu0 0
    %1278 = vmatmul.mubr.bf16.gmra.mxu0 %v1088
    %v1279 = vpop.f32.mrf.mxu0
    %v1280 = vadd.f32 0.0, %v1279
    %v1281 = vpop.f32.mrf.mxu0
    %v1282 = vpop.f32.mrf.mxu0
    %v1283 = vadd.f32 0.0, %v1282
    %v1284 = vpop.f32.mrf.mxu0
    %1285 = vmatprep.mubr.bf16.mxu0 0
    %1286 = vmatmul.mubr.bf16.gmra.mxu0 %v1089
    %v1287 = vpop.f32.mrf.mxu0
    %v1288 = vadd.f32 0.0, %v1287
    %v1289 = vpop.f32.mrf.mxu0
    %v1290 = vpop.f32.mrf.mxu0
    %v1291 = vadd.f32 0.0, %v1290
    %v1292 = vpop.f32.mrf.mxu0
    %1293 = vmatprep.mubr.bf16.mxu0 0
    %1294 = vmatmul.mubr.bf16.gmra.mxu0 %v1090
    %v1295 = vpop.f32.mrf.mxu0
    %v1296 = vadd.f32 0.0, %v1295
    %v1297 = vpop.f32.mrf.mxu0
    %v1298 = vpop.f32.mrf.mxu0
    %v1299 = vadd.f32 0.0, %v1298
    %v1300 = vpop.f32.mrf.mxu0
    %1301 = vmatprep.mubr.bf16.mxu0 0
    %1302 = vmatmul.mubr.bf16.gmra.mxu0 %v1091
    %v1303 = vpop.f32.mrf.mxu0
    %v1304 = vadd.f32 0.0, %v1303
    %v1305 = vpop.f32.mrf.mxu0
    %v1306 = vpop.f32.mrf.mxu0
    %v1307 = vadd.f32 0.0, %v1306
    %v1308 = vpop.f32.mrf.mxu0
    %1309 = vmatprep.mubr.bf16.mxu0 0
    %1310 = vmatmul.mubr.bf16.gmra.mxu0 %v1092
    %v1311 = vpop.f32.mrf.mxu0
    %v1312 = vadd.f32 0.0, %v1311
    %v1313 = vpop.f32.mrf.mxu0
    %v1314 = vpop.f32.mrf.mxu0
    %v1315 = vadd.f32 0.0, %v1314
    %v1316 = vpop.f32.mrf.mxu0
    %1317 = vdwg.mxu0
    %v1318 = vadd.f32 %v919, %v1192
    %v1319 = vadd.f32 %v922, %v1195
    %v1320 = vadd.f32 %v927, %v1200
    %v1321 = vadd.f32 %v930, %v1203
    %v1322 = vadd.f32 %v935, %v1208
    %v1323 = vadd.f32 %v938, %v1211
    %v1324 = vadd.f32 %v943, %v1216
    %v1325 = vadd.f32 %v946, %v1219
    %v1326 = vadd.f32 %v951, %v1224
    %v1327 = vadd.f32 %v954, %v1227
    %v1328 = vadd.f32 %v959, %v1232
    %v1329 = vadd.f32 %v962, %v1235
    %v1330 = vadd.f32 %v967, %v1240
    %v1331 = vadd.f32 %v970, %v1243
    %v1332 = vadd.f32 %v975, %v1248
    %v1333 = vadd.f32 %v978, %v1251
    %v1334 = vadd.f32 %v983, %v1256
    %v1335 = vadd.f32 %v986, %v1259
    %v1336 = vadd.f32 %v991, %v1264
    %v1337 = vadd.f32 %v994, %v1267
    %v1338 = vadd.f32 %v999, %v1272
    %v1339 = vadd.f32 %v1002, %v1275
    %v1340 = vadd.f32 %v1007, %v1280
    %v1341 = vadd.f32 %v1010, %v1283
    %v1342 = vadd.f32 %v1015, %v1288
    %v1343 = vadd.f32 %v1018, %v1291
    %v1344 = vadd.f32 %v1023, %v1296
    %v1345 = vadd.f32 %v1026, %v1299
    %v1346 = vadd.f32 %v1031, %v1304
    %v1347 = vadd.f32 %v1034, %v1307
    %v1348 = vadd.f32 %v1039, %v1312
    %v1349 = vadd.f32 %v1042, %v1315
    %v1350 = vld [vmem:[#allocation2 + $0x9] sm:$0xff]
    %v1351 = vld [vmem:[#allocation2 + $0x11] sm:$0xff]
    %v1352 = vld [vmem:[#allocation2 + $0x19] sm:$0xff]
    %v1353 = vld [vmem:[#allocation2 + $0x21] sm:$0xff]
    %v1354 = vld [vmem:[#allocation2 + $0x29] sm:$0xff]
    %v1355 = vld [vmem:[#allocation2 + $0x31] sm:$0xff]
    %v1356 = vld [vmem:[#allocation2 + $0x39] sm:$0xff]
    %v1357 = vld [vmem:[#allocation2 + $0x41] sm:$0xff]
    %v1358 = vld [vmem:[#allocation2 + $0x49] sm:$0xff]
    %v1359 = vld [vmem:[#allocation2 + $0x51] sm:$0xff]
    %v1360 = vld [vmem:[#allocation2 + $0x59] sm:$0xff]
    %v1361 = vld [vmem:[#allocation2 + $0x61] sm:$0xff]
    %v1362 = vld [vmem:[#allocation2 + $0x69] sm:$0xff]
    %v1363 = vld [vmem:[#allocation2 + $0x71] sm:$0xff]
    %v1364 = vld [vmem:[#allocation2 + $0x79] sm:$0xff]
    %v1365 = vld [vmem:[#allocation2 + $0x81] sm:$0xff]
    %v1366 = vld [vmem:[#allocation2 + $0x89] sm:$0xff]
    %v1367 = vld [vmem:[#allocation2 + $0x91] sm:$0xff]
    %v1368 = vld [vmem:[#allocation2 + $0x99] sm:$0xff]
    %v1369 = vld [vmem:[#allocation2 + $0xa1] sm:$0xff]
    %v1370 = vld [vmem:[#allocation2 + $0xa9] sm:$0xff]
    %v1371 = vld [vmem:[#allocation2 + $0xb1] sm:$0xff]
    %v1372 = vld [vmem:[#allocation2 + $0xb9] sm:$0xff]
    %v1373 = vld [vmem:[#allocation2 + $0xc1] sm:$0xff]
    %v1374 = vld [vmem:[#allocation2 + $0xc9] sm:$0xff]
    %v1375 = vld [vmem:[#allocation2 + $0xd1] sm:$0xff]
    %v1376 = vld [vmem:[#allocation2 + $0xd9] sm:$0xff]
    %v1377 = vld [vmem:[#allocation2 + $0xe1] sm:$0xff]
    %v1378 = vld [vmem:[#allocation2 + $0xe9] sm:$0xff]
    %v1379 = vld [vmem:[#allocation2 + $0xf1] sm:$0xff]
    %v1380 = vld [vmem:[#allocation2 + $0xf9] sm:$0xff]
    %v1381 = vld [vmem:[#allocation2 + $0x101] sm:$0xff]
    %v1382 = vpack.c.bf16 %v1351, %v1350
    %v1383 = vpack.c.bf16 %v1353, %v1352
    %v1384 = vpack.c.bf16 %v1355, %v1354
    %v1385 = vpack.c.bf16 %v1357, %v1356
    %v1386 = vpack.c.bf16 %v1359, %v1358
    %v1387 = vpack.c.bf16 %v1361, %v1360
    %v1388 = vpack.c.bf16 %v1363, %v1362
    %v1389 = vpack.c.bf16 %v1365, %v1364
    %v1390 = vpack.c.bf16 %v1367, %v1366
    %v1391 = vpack.c.bf16 %v1369, %v1368
    %v1392 = vpack.c.bf16 %v1371, %v1370
    %v1393 = vpack.c.bf16 %v1373, %v1372
    %v1394 = vpack.c.bf16 %v1375, %v1374
    %v1395 = vpack.c.bf16 %v1377, %v1376
    %v1396 = vpack.c.bf16 %v1379, %v1378
    %v1397 = vpack.c.bf16 %v1381, %v1380
    %v1398 = vld [vmem:[%s2 + $0xc0] sm:$0xf]
    %v1399 = vld [vmem:[%s2 + $0xc4] sm:$0xf]
    %v1400 = vld [vmem:[%s2 + $0xc8] sm:$0xf]
    %v1401 = vld [vmem:[%s2 + $0xcc] sm:$0xf]
    %v1402 = vld [vmem:[%s2 + $0xd0] sm:$0xf]
    %v1403 = vld [vmem:[%s2 + $0xd4] sm:$0xf]
    %v1404 = vld [vmem:[%s2 + $0xd8] sm:$0xf]
    %v1405 = vld [vmem:[%s2 + $0xdc] sm:$0xf]
    %v1406 = vld [vmem:[%s2 + $0xe0] sm:$0xf]
    %v1407 = vld [vmem:[%s2 + $0xe4] sm:$0xf]
    %v1408 = vld [vmem:[%s2 + $0xe8] sm:$0xf]
    %v1409 = vld [vmem:[%s2 + $0xec] sm:$0xf]
    %v1410 = vld [vmem:[%s2 + $0xf0] sm:$0xf]
    %v1411 = vld [vmem:[%s2 + $0xf4] sm:$0xf]
    %v1412 = vld [vmem:[%s2 + $0xf8] sm:$0xf]
    %v1413 = vld [vmem:[%s2 + $0xfc] sm:$0xf]
    %v1430 = vunpack.c.l.b16 %v1398
    %v1431 = vunpack.c.l.b16 %v1399
    %v1432 = vunpack.c.l.b16 %v1400
    %v1433 = vunpack.c.l.b16 %v1401
    %v1434 = vunpack.c.l.b16 %v1402
    %v1435 = vunpack.c.l.b16 %v1403
    %v1436 = vunpack.c.l.b16 %v1404
    %v1437 = vunpack.c.l.b16 %v1405
    %v1438 = vunpack.c.l.b16 %v1406
    %v1439 = vunpack.c.l.b16 %v1407
    %v1440 = vunpack.c.l.b16 %v1408
    %v1441 = vunpack.c.l.b16 %v1409
    %v1442 = vunpack.c.l.b16 %v1410
    %v1443 = vunpack.c.l.b16 %v1411
    %v1444 = vunpack.c.l.b16 %v1412
    %v1445 = vunpack.c.l.b16 %v1413
    %v1446 = vpack.c.b16 %v1431, %v1430
    %v1447 = vpack.c.b16 %v1433, %v1432
    %v1448 = vpack.c.b16 %v1435, %v1434
    %v1449 = vpack.c.b16 %v1437, %v1436
    %v1450 = vpack.c.b16 %v1439, %v1438
    %v1451 = vpack.c.b16 %v1441, %v1440
    %v1452 = vpack.c.b16 %v1443, %v1442
    %v1453 = vpack.c.b16 %v1445, %v1444
    %1462 = vmatprep.subr.bf16.mxu0 0
    %1463 = vmatpush1.bf16.msra.mxu0 %v1453
    %1464 = vmatprep.subr.bf16.mxu0 0
    %1465 = vmatpush1.bf16.msra.mxu0 %v1452
    %1466 = vmatprep.subr.bf16.mxu0 0
    %1467 = vmatpush1.bf16.msra.mxu0 %v1451
    %1468 = vmatprep.subr.bf16.mxu0 0
    %1469 = vmatpush1.bf16.msra.mxu0 %v1450
    %1470 = vmatprep.subr.bf16.mxu0 0
    %1471 = vmatpush1.bf16.msra.mxu0 %v1449
    %1472 = vmatprep.subr.bf16.mxu0 0
    %1473 = vmatpush1.bf16.msra.mxu0 %v1448
    %1474 = vmatprep.subr.bf16.mxu0 0
    %1475 = vmatpush1.bf16.msra.mxu0 %v1447
    %1476 = vmatprep.subr.bf16.mxu0 0
    %1477 = vmatpush1.bf16.msra.mxu0 %v1446
    %1478 = vmatprep.subr.bf16.mxu0 0
    %1479 = vmatpush2.bf16.msra.mxu0 0
    %1480 = vmatprep.subr.bf16.mxu0 0
    %1481 = vmatpush2.bf16.msra.mxu0 0
    %1482 = vmatprep.subr.bf16.mxu0 0
    %1483 = vmatpush2.bf16.msra.mxu0 0
    %1484 = vmatprep.subr.bf16.mxu0 0
    %1485 = vmatpush2.bf16.msra.mxu0 0
    %1486 = vmatprep.subr.bf16.mxu0 0
    %1487 = vmatpush2.bf16.msra.mxu0 0
    %1488 = vmatprep.subr.bf16.mxu0 0
    %1489 = vmatpush2.bf16.msra.mxu0 0
    %1490 = vmatprep.subr.bf16.mxu0 0
    %1491 = vmatpush2.bf16.msra.mxu0 0
    %1492 = vmatprep.subr.bf16.mxu0 0
    %1493 = vmatpush2.bf16.msra.mxu0 0
    %1494 = vmatprep.mubr.bf16.mxu0 0
    %1495 = vmatmul.mubr.bf16.gmra.mxu0 %v1382
    %v1496 = vpop.f32.mrf.mxu0
    %v1497 = vadd.f32 0.0, %v1496
    %v1498 = vpop.f32.mrf.mxu0
    %v1499 = vpop.f32.mrf.mxu0
    %v1500 = vadd.f32 0.0, %v1499
    %v1501 = vpop.f32.mrf.mxu0
    %1502 = vmatprep.mubr.bf16.mxu0 0
    %1503 = vmatmul.mubr.bf16.gmra.mxu0 %v1383
    %v1504 = vpop.f32.mrf.mxu0
    %v1505 = vadd.f32 0.0, %v1504
    %v1506 = vpop.f32.mrf.mxu0
    %v1507 = vpop.f32.mrf.mxu0
    %v1508 = vadd.f32 0.0, %v1507
    %v1509 = vpop.f32.mrf.mxu0
    %1510 = vmatprep.mubr.bf16.mxu0 0
    %1511 = vmatmul.mubr.bf16.gmra.mxu0 %v1384
    %v1512 = vpop.f32.mrf.mxu0
    %v1513 = vadd.f32 0.0, %v1512
    %v1514 = vpop.f32.mrf.mxu0
    %v1515 = vpop.f32.mrf.mxu0
    %v1516 = vadd.f32 0.0, %v1515
    %v1517 = vpop.f32.mrf.mxu0
    %1518 = vmatprep.mubr.bf16.mxu0 0
    %1519 = vmatmul.mubr.bf16.gmra.mxu0 %v1385
    %v1520 = vpop.f32.mrf.mxu0
    %v1521 = vadd.f32 0.0, %v1520
    %v1522 = vpop.f32.mrf.mxu0
    %v1523 = vpop.f32.mrf.mxu0
    %v1524 = vadd.f32 0.0, %v1523
    %v1525 = vpop.f32.mrf.mxu0
    %1526 = vmatprep.mubr.bf16.mxu0 0
    %1527 = vmatmul.mubr.bf16.gmra.mxu0 %v1386
    %v1528 = vpop.f32.mrf.mxu0
    %v1529 = vadd.f32 0.0, %v1528
    %v1530 = vpop.f32.mrf.mxu0
    %v1531 = vpop.f32.mrf.mxu0
    %v1532 = vadd.f32 0.0, %v1531
    %v1533 = vpop.f32.mrf.mxu0
    %1534 = vmatprep.mubr.bf16.mxu0 0
    %1535 = vmatmul.mubr.bf16.gmra.mxu0 %v1387
    %v1536 = vpop.f32.mrf.mxu0
    %v1537 = vadd.f32 0.0, %v1536
    %v1538 = vpop.f32.mrf.mxu0
    %v1539 = vpop.f32.mrf.mxu0
    %v1540 = vadd.f32 0.0, %v1539
    %v1541 = vpop.f32.mrf.mxu0
    %1542 = vmatprep.mubr.bf16.mxu0 0
    %1543 = vmatmul.mubr.bf16.gmra.mxu0 %v1388
    %v1544 = vpop.f32.mrf.mxu0
    %v1545 = vadd.f32 0.0, %v1544
    %v1546 = vpop.f32.mrf.mxu0
    %v1547 = vpop.f32.mrf.mxu0
    %v1548 = vadd.f32 0.0, %v1547
    %v1549 = vpop.f32.mrf.mxu0
    %1550 = vmatprep.mubr.bf16.mxu0 0
    %1551 = vmatmul.mubr.bf16.gmra.mxu0 %v1389
    %v1552 = vpop.f32.mrf.mxu0
    %v1553 = vadd.f32 0.0, %v1552
    %v1554 = vpop.f32.mrf.mxu0
    %v1555 = vpop.f32.mrf.mxu0
    %v1556 = vadd.f32 0.0, %v1555
    %v1557 = vpop.f32.mrf.mxu0
    %1558 = vmatprep.mubr.bf16.mxu0 0
    %1559 = vmatmul.mubr.bf16.gmra.mxu0 %v1390
    %v1560 = vpop.f32.mrf.mxu0
    %v1561 = vadd.f32 0.0, %v1560
    %v1562 = vpop.f32.mrf.mxu0
    %v1563 = vpop.f32.mrf.mxu0
    %v1564 = vadd.f32 0.0, %v1563
    %v1565 = vpop.f32.mrf.mxu0
    %1566 = vmatprep.mubr.bf16.mxu0 0
    %1567 = vmatmul.mubr.bf16.gmra.mxu0 %v1391
    %v1568 = vpop.f32.mrf.mxu0
    %v1569 = vadd.f32 0.0, %v1568
    %v1570 = vpop.f32.mrf.mxu0
    %v1571 = vpop.f32.mrf.mxu0
    %v1572 = vadd.f32 0.0, %v1571
    %v1573 = vpop.f32.mrf.mxu0
    %1574 = vmatprep.mubr.bf16.mxu0 0
    %1575 = vmatmul.mubr.bf16.gmra.mxu0 %v1392
    %v1576 = vpop.f32.mrf.mxu0
    %v1577 = vadd.f32 0.0, %v1576
    %v1578 = vpop.f32.mrf.mxu0
    %v1579 = vpop.f32.mrf.mxu0
    %v1580 = vadd.f32 0.0, %v1579
    %v1581 = vpop.f32.mrf.mxu0
    %1582 = vmatprep.mubr.bf16.mxu0 0
    %1583 = vmatmul.mubr.bf16.gmra.mxu0 %v1393
    %v1584 = vpop.f32.mrf.mxu0
    %v1585 = vadd.f32 0.0, %v1584
    %v1586 = vpop.f32.mrf.mxu0
    %v1587 = vpop.f32.mrf.mxu0
    %v1588 = vadd.f32 0.0, %v1587
    %v1589 = vpop.f32.mrf.mxu0
    %1590 = vmatprep.mubr.bf16.mxu0 0
    %1591 = vmatmul.mubr.bf16.gmra.mxu0 %v1394
    %v1592 = vpop.f32.mrf.mxu0
    %v1593 = vadd.f32 0.0, %v1592
    %v1594 = vpop.f32.mrf.mxu0
    %v1595 = vpop.f32.mrf.mxu0
    %v1596 = vadd.f32 0.0, %v1595
    %v1597 = vpop.f32.mrf.mxu0
    %1598 = vmatprep.mubr.bf16.mxu0 0
    %1599 = vmatmul.mubr.bf16.gmra.mxu0 %v1395
    %v1600 = vpop.f32.mrf.mxu0
    %v1601 = vadd.f32 0.0, %v1600
    %v1602 = vpop.f32.mrf.mxu0
    %v1603 = vpop.f32.mrf.mxu0
    %v1604 = vadd.f32 0.0, %v1603
    %v1605 = vpop.f32.mrf.mxu0
    %1606 = vmatprep.mubr.bf16.mxu0 0
    %1607 = vmatmul.mubr.bf16.gmra.mxu0 %v1396
    %v1608 = vpop.f32.mrf.mxu0
    %v1609 = vadd.f32 0.0, %v1608
    %v1610 = vpop.f32.mrf.mxu0
    %v1611 = vpop.f32.mrf.mxu0
    %v1612 = vadd.f32 0.0, %v1611
    %v1613 = vpop.f32.mrf.mxu0
    %1614 = vmatprep.mubr.bf16.mxu0 0
    %1615 = vmatmul.mubr.bf16.gmra.mxu0 %v1397
    %v1616 = vpop.f32.mrf.mxu0
    %v1617 = vadd.f32 0.0, %v1616
    %v1618 = vpop.f32.mrf.mxu0
    %v1619 = vpop.f32.mrf.mxu0
    %v1620 = vadd.f32 0.0, %v1619
    %v1621 = vpop.f32.mrf.mxu0
    %1622 = vdwg.mxu0
    %v1623 = vadd.f32 %v1318, %v1497
    %v1624 = vadd.f32 %v1319, %v1500
    %v1625 = vadd.f32 %v1320, %v1505
    %v1626 = vadd.f32 %v1321, %v1508
    %v1627 = vadd.f32 %v1322, %v1513
    %v1628 = vadd.f32 %v1323, %v1516
    %v1629 = vadd.f32 %v1324, %v1521
    %v1630 = vadd.f32 %v1325, %v1524
    %v1631 = vadd.f32 %v1326, %v1529
    %v1632 = vadd.f32 %v1327, %v1532
    %v1633 = vadd.f32 %v1328, %v1537
    %v1634 = vadd.f32 %v1329, %v1540
    %v1635 = vadd.f32 %v1330, %v1545
    %v1636 = vadd.f32 %v1331, %v1548
    %v1637 = vadd.f32 %v1332, %v1553
    %v1638 = vadd.f32 %v1333, %v1556
    %v1639 = vadd.f32 %v1334, %v1561
    %v1640 = vadd.f32 %v1335, %v1564
    %v1641 = vadd.f32 %v1336, %v1569
    %v1642 = vadd.f32 %v1337, %v1572
    %v1643 = vadd.f32 %v1338, %v1577
    %v1644 = vadd.f32 %v1339, %v1580
    %v1645 = vadd.f32 %v1340, %v1585
    %v1646 = vadd.f32 %v1341, %v1588
    %v1647 = vadd.f32 %v1342, %v1593
    %v1648 = vadd.f32 %v1343, %v1596
    %v1649 = vadd.f32 %v1344, %v1601
    %v1650 = vadd.f32 %v1345, %v1604
    %v1651 = vadd.f32 %v1346, %v1609
    %v1652 = vadd.f32 %v1347, %v1612
    %v1653 = vadd.f32 %v1348, %v1617
    %v1654 = vadd.f32 %v1349, %v1620
    %v1655 = vld [vmem:[#allocation2 + $0xa] sm:$0xff]
    %v1656 = vld [vmem:[#allocation2 + $0x12] sm:$0xff]
    %v1657 = vld [vmem:[#allocation2 + $0x1a] sm:$0xff]
    %v1658 = vld [vmem:[#allocation2 + $0x22] sm:$0xff]
    %v1659 = vld [vmem:[#allocation2 + $0x2a] sm:$0xff]
    %v1660 = vld [vmem:[#allocation2 + $0x32] sm:$0xff]
    %v1661 = vld [vmem:[#allocation2 + $0x3a] sm:$0xff]
    %v1662 = vld [vmem:[#allocation2 + $0x42] sm:$0xff]
    %v1663 = vld [vmem:[#allocation2 + $0x4a] sm:$0xff]
    %v1664 = vld [vmem:[#allocation2 + $0x52] sm:$0xff]
    %v1665 = vld [vmem:[#allocation2 + $0x5a] sm:$0xff]
    %v1666 = vld [vmem:[#allocation2 + $0x62] sm:$0xff]
    %v1667 = vld [vmem:[#allocation2 + $0x6a] sm:$0xff]
    %v1668 = vld [vmem:[#allocation2 + $0x72] sm:$0xff]
    %v1669 = vld [vmem:[#allocation2 + $0x7a] sm:$0xff]
    %v1670 = vld [vmem:[#allocation2 + $0x82] sm:$0xff]
    %v1671 = vld [vmem:[#allocation2 + $0x8a] sm:$0xff]
    %v1672 = vld [vmem:[#allocation2 + $0x92] sm:$0xff]
    %v1673 = vld [vmem:[#allocation2 + $0x9a] sm:$0xff]
    %v1674 = vld [vmem:[#allocation2 + $0xa2] sm:$0xff]
    %v1675 = vld [vmem:[#allocation2 + $0xaa] sm:$0xff]
    %v1676 = vld [vmem:[#allocation2 + $0xb2] sm:$0xff]
    %v1677 = vld [vmem:[#allocation2 + $0xba] sm:$0xff]
    %v1678 = vld [vmem:[#allocation2 + $0xc2] sm:$0xff]
    %v1679 = vld [vmem:[#allocation2 + $0xca] sm:$0xff]
    %v1680 = vld [vmem:[#allocation2 + $0xd2] sm:$0xff]
    %v1681 = vld [vmem:[#allocation2 + $0xda] sm:$0xff]
    %v1682 = vld [vmem:[#allocation2 + $0xe2] sm:$0xff]
    %v1683 = vld [vmem:[#allocation2 + $0xea] sm:$0xff]
    %v1684 = vld [vmem:[#allocation2 + $0xf2] sm:$0xff]
    %v1685 = vld [vmem:[#allocation2 + $0xfa] sm:$0xff]
    %v1686 = vld [vmem:[#allocation2 + $0x102] sm:$0xff]
    %v1687 = vpack.c.bf16 %v1656, %v1655
    %v1688 = vpack.c.bf16 %v1658, %v1657
    %v1689 = vpack.c.bf16 %v1660, %v1659
    %v1690 = vpack.c.bf16 %v1662, %v1661
    %v1691 = vpack.c.bf16 %v1664, %v1663
    %v1692 = vpack.c.bf16 %v1666, %v1665
    %v1693 = vpack.c.bf16 %v1668, %v1667
    %v1694 = vpack.c.bf16 %v1670, %v1669
    %v1695 = vpack.c.bf16 %v1672, %v1671
    %v1696 = vpack.c.bf16 %v1674, %v1673
    %v1697 = vpack.c.bf16 %v1676, %v1675
    %v1698 = vpack.c.bf16 %v1678, %v1677
    %v1699 = vpack.c.bf16 %v1680, %v1679
    %v1700 = vpack.c.bf16 %v1682, %v1681
    %v1701 = vpack.c.bf16 %v1684, %v1683
    %v1702 = vpack.c.bf16 %v1686, %v1685
    %v1703 = vld [vmem:[%s2 + $0x100] sm:$0xf]
    %v1704 = vld [vmem:[%s2 + $0x104] sm:$0xf]
    %v1705 = vld [vmem:[%s2 + $0x108] sm:$0xf]
    %v1706 = vld [vmem:[%s2 + $0x10c] sm:$0xf]
    %v1707 = vld [vmem:[%s2 + $0x110] sm:$0xf]
    %v1708 = vld [vmem:[%s2 + $0x114] sm:$0xf]
    %v1709 = vld [vmem:[%s2 + $0x118] sm:$0xf]
    %v1710 = vld [vmem:[%s2 + $0x11c] sm:$0xf]
    %v1711 = vld [vmem:[%s2 + $0x120] sm:$0xf]
    %v1712 = vld [vmem:[%s2 + $0x124] sm:$0xf]
    %v1713 = vld [vmem:[%s2 + $0x128] sm:$0xf]
    %v1714 = vld [vmem:[%s2 + $0x12c] sm:$0xf]
    %v1715 = vld [vmem:[%s2 + $0x130] sm:$0xf]
    %v1716 = vld [vmem:[%s2 + $0x134] sm:$0xf]
    %v1717 = vld [vmem:[%s2 + $0x138] sm:$0xf]
    %v1718 = vld [vmem:[%s2 + $0x13c] sm:$0xf]
    %v1735 = vunpack.c.l.b16 %v1703
    %v1736 = vunpack.c.l.b16 %v1704
    %v1737 = vunpack.c.l.b16 %v1705
    %v1738 = vunpack.c.l.b16 %v1706
    %v1739 = vunpack.c.l.b16 %v1707
    %v1740 = vunpack.c.l.b16 %v1708
    %v1741 = vunpack.c.l.b16 %v1709
    %v1742 = vunpack.c.l.b16 %v1710
    %v1743 = vunpack.c.l.b16 %v1711
    %v1744 = vunpack.c.l.b16 %v1712
    %v1745 = vunpack.c.l.b16 %v1713
    %v1746 = vunpack.c.l.b16 %v1714
    %v1747 = vunpack.c.l.b16 %v1715
    %v1748 = vunpack.c.l.b16 %v1716
    %v1749 = vunpack.c.l.b16 %v1717
    %v1750 = vunpack.c.l.b16 %v1718
    %v1751 = vpack.c.b16 %v1736, %v1735
    %v1752 = vpack.c.b16 %v1738, %v1737
    %v1753 = vpack.c.b16 %v1740, %v1739
    %v1754 = vpack.c.b16 %v1742, %v1741
    %v1755 = vpack.c.b16 %v1744, %v1743
    %v1756 = vpack.c.b16 %v1746, %v1745
    %v1757 = vpack.c.b16 %v1748, %v1747
    %v1758 = vpack.c.b16 %v1750, %v1749
    %1767 = vmatprep.subr.bf16.mxu0 0
    %1768 = vmatpush1.bf16.msra.mxu0 %v1758
    %1769 = vmatprep.subr.bf16.mxu0 0
    %1770 = vmatpush1.bf16.msra.mxu0 %v1757
    %1771 = vmatprep.subr.bf16.mxu0 0
    %1772 = vmatpush1.bf16.msra.mxu0 %v1756
    %1773 = vmatprep.subr.bf16.mxu0 0
    %1774 = vmatpush1.bf16.msra.mxu0 %v1755
    %1775 = vmatprep.subr.bf16.mxu0 0
    %1776 = vmatpush1.bf16.msra.mxu0 %v1754
    %1777 = vmatprep.subr.bf16.mxu0 0
    %1778 = vmatpush1.bf16.msra.mxu0 %v1753
    %1779 = vmatprep.subr.bf16.mxu0 0
    %1780 = vmatpush1.bf16.msra.mxu0 %v1752
    %1781 = vmatprep.subr.bf16.mxu0 0
    %1782 = vmatpush1.bf16.msra.mxu0 %v1751
    %1783 = vmatprep.subr.bf16.mxu0 0
    %1784 = vmatpush2.bf16.msra.mxu0 0
    %1785 = vmatprep.subr.bf16.mxu0 0
    %1786 = vmatpush2.bf16.msra.mxu0 0
    %1787 = vmatprep.subr.bf16.mxu0 0
    %1788 = vmatpush2.bf16.msra.mxu0 0
    %1789 = vmatprep.subr.bf16.mxu0 0
    %1790 = vmatpush2.bf16.msra.mxu0 0
    %1791 = vmatprep.subr.bf16.mxu0 0
    %1792 = vmatpush2.bf16.msra.mxu0 0
    %1793 = vmatprep.subr.bf16.mxu0 0
    %1794 = vmatpush2.bf16.msra.mxu0 0
    %1795 = vmatprep.subr.bf16.mxu0 0
    %1796 = vmatpush2.bf16.msra.mxu0 0
    %1797 = vmatprep.subr.bf16.mxu0 0
    %1798 = vmatpush2.bf16.msra.mxu0 0
    %1799 = vmatprep.mubr.bf16.mxu0 0
    %1800 = vmatmul.mubr.bf16.gmra.mxu0 %v1687
    %v1801 = vpop.f32.mrf.mxu0
    %v1802 = vadd.f32 0.0, %v1801
    %v1803 = vpop.f32.mrf.mxu0
    %v1804 = vpop.f32.mrf.mxu0
    %v1805 = vadd.f32 0.0, %v1804
    %v1806 = vpop.f32.mrf.mxu0
    %1807 = vmatprep.mubr.bf16.mxu0 0
    %1808 = vmatmul.mubr.bf16.gmra.mxu0 %v1688
    %v1809 = vpop.f32.mrf.mxu0
    %v1810 = vadd.f32 0.0, %v1809
    %v1811 = vpop.f32.mrf.mxu0
    %v1812 = vpop.f32.mrf.mxu0
    %v1813 = vadd.f32 0.0, %v1812
    %v1814 = vpop.f32.mrf.mxu0
    %1815 = vmatprep.mubr.bf16.mxu0 0
    %1816 = vmatmul.mubr.bf16.gmra.mxu0 %v1689
    %v1817 = vpop.f32.mrf.mxu0
    %v1818 = vadd.f32 0.0, %v1817
    %v1819 = vpop.f32.mrf.mxu0
    %v1820 = vpop.f32.mrf.mxu0
    %v1821 = vadd.f32 0.0, %v1820
    %v1822 = vpop.f32.mrf.mxu0
    %1823 = vmatprep.mubr.bf16.mxu0 0
    %1824 = vmatmul.mubr.bf16.gmra.mxu0 %v1690
    %v1825 = vpop.f32.mrf.mxu0
    %v1826 = vadd.f32 0.0, %v1825
    %v1827 = vpop.f32.mrf.mxu0
    %v1828 = vpop.f32.mrf.mxu0
    %v1829 = vadd.f32 0.0, %v1828
    %v1830 = vpop.f32.mrf.mxu0
    %1831 = vmatprep.mubr.bf16.mxu0 0
    %1832 = vmatmul.mubr.bf16.gmra.mxu0 %v1691
    %v1833 = vpop.f32.mrf.mxu0
    %v1834 = vadd.f32 0.0, %v1833
    %v1835 = vpop.f32.mrf.mxu0
    %v1836 = vpop.f32.mrf.mxu0
    %v1837 = vadd.f32 0.0, %v1836
    %v1838 = vpop.f32.mrf.mxu0
    %1839 = vmatprep.mubr.bf16.mxu0 0
    %1840 = vmatmul.mubr.bf16.gmra.mxu0 %v1692
    %v1841 = vpop.f32.mrf.mxu0
    %v1842 = vadd.f32 0.0, %v1841
    %v1843 = vpop.f32.mrf.mxu0
    %v1844 = vpop.f32.mrf.mxu0
    %v1845 = vadd.f32 0.0, %v1844
    %v1846 = vpop.f32.mrf.mxu0
    %1847 = vmatprep.mubr.bf16.mxu0 0
    %1848 = vmatmul.mubr.bf16.gmra.mxu0 %v1693
    %v1849 = vpop.f32.mrf.mxu0
    %v1850 = vadd.f32 0.0, %v1849
    %v1851 = vpop.f32.mrf.mxu0
    %v1852 = vpop.f32.mrf.mxu0
    %v1853 = vadd.f32 0.0, %v1852
    %v1854 = vpop.f32.mrf.mxu0
    %1855 = vmatprep.mubr.bf16.mxu0 0
    %1856 = vmatmul.mubr.bf16.gmra.mxu0 %v1694
    %v1857 = vpop.f32.mrf.mxu0
    %v1858 = vadd.f32 0.0, %v1857
    %v1859 = vpop.f32.mrf.mxu0
    %v1860 = vpop.f32.mrf.mxu0
    %v1861 = vadd.f32 0.0, %v1860
    %v1862 = vpop.f32.mrf.mxu0
    %1863 = vmatprep.mubr.bf16.mxu0 0
    %1864 = vmatmul.mubr.bf16.gmra.mxu0 %v1695
    %v1865 = vpop.f32.mrf.mxu0
    %v1866 = vadd.f32 0.0, %v1865
    %v1867 = vpop.f32.mrf.mxu0
    %v1868 = vpop.f32.mrf.mxu0
    %v1869 = vadd.f32 0.0, %v1868
    %v1870 = vpop.f32.mrf.mxu0
    %1871 = vmatprep.mubr.bf16.mxu0 0
    %1872 = vmatmul.mubr.bf16.gmra.mxu0 %v1696
    %v1873 = vpop.f32.mrf.mxu0
    %v1874 = vadd.f32 0.0, %v1873
    %v1875 = vpop.f32.mrf.mxu0
    %v1876 = vpop.f32.mrf.mxu0
    %v1877 = vadd.f32 0.0, %v1876
    %v1878 = vpop.f32.mrf.mxu0
    %1879 = vmatprep.mubr.bf16.mxu0 0
    %1880 = vmatmul.mubr.bf16.gmra.mxu0 %v1697
    %v1881 = vpop.f32.mrf.mxu0
    %v1882 = vadd.f32 0.0, %v1881
    %v1883 = vpop.f32.mrf.mxu0
    %v1884 = vpop.f32.mrf.mxu0
    %v1885 = vadd.f32 0.0, %v1884
    %v1886 = vpop.f32.mrf.mxu0
    %1887 = vmatprep.mubr.bf16.mxu0 0
    %1888 = vmatmul.mubr.bf16.gmra.mxu0 %v1698
    %v1889 = vpop.f32.mrf.mxu0
    %v1890 = vadd.f32 0.0, %v1889
    %v1891 = vpop.f32.mrf.mxu0
    %v1892 = vpop.f32.mrf.mxu0
    %v1893 = vadd.f32 0.0, %v1892
    %v1894 = vpop.f32.mrf.mxu0
    %1895 = vmatprep.mubr.bf16.mxu0 0
    %1896 = vmatmul.mubr.bf16.gmra.mxu0 %v1699
    %v1897 = vpop.f32.mrf.mxu0
    %v1898 = vadd.f32 0.0, %v1897
    %v1899 = vpop.f32.mrf.mxu0
    %v1900 = vpop.f32.mrf.mxu0
    %v1901 = vadd.f32 0.0, %v1900
    %v1902 = vpop.f32.mrf.mxu0
    %1903 = vmatprep.mubr.bf16.mxu0 0
    %1904 = vmatmul.mubr.bf16.gmra.mxu0 %v1700
    %v1905 = vpop.f32.mrf.mxu0
    %v1906 = vadd.f32 0.0, %v1905
    %v1907 = vpop.f32.mrf.mxu0
    %v1908 = vpop.f32.mrf.mxu0
    %v1909 = vadd.f32 0.0, %v1908
    %v1910 = vpop.f32.mrf.mxu0
    %1911 = vmatprep.mubr.bf16.mxu0 0
    %1912 = vmatmul.mubr.bf16.gmra.mxu0 %v1701
    %v1913 = vpop.f32.mrf.mxu0
    %v1914 = vadd.f32 0.0, %v1913
    %v1915 = vpop.f32.mrf.mxu0
    %v1916 = vpop.f32.mrf.mxu0
    %v1917 = vadd.f32 0.0, %v1916
    %v1918 = vpop.f32.mrf.mxu0
    %1919 = vmatprep.mubr.bf16.mxu0 0
    %1920 = vmatmul.mubr.bf16.gmra.mxu0 %v1702
    %v1921 = vpop.f32.mrf.mxu0
    %v1922 = vadd.f32 0.0, %v1921
    %v1923 = vpop.f32.mrf.mxu0
    %v1924 = vpop.f32.mrf.mxu0
    %v1925 = vadd.f32 0.0, %v1924
    %v1926 = vpop.f32.mrf.mxu0
    %1927 = vdwg.mxu0
    %v1928 = vadd.f32 %v1623, %v1802
    %v1929 = vadd.f32 %v1624, %v1805
    %v1930 = vadd.f32 %v1625, %v1810
    %v1931 = vadd.f32 %v1626, %v1813
    %v1932 = vadd.f32 %v1627, %v1818
    %v1933 = vadd.f32 %v1628, %v1821
    %v1934 = vadd.f32 %v1629, %v1826
    %v1935 = vadd.f32 %v1630, %v1829
    %v1936 = vadd.f32 %v1631, %v1834
    %v1937 = vadd.f32 %v1632, %v1837
    %v1938 = vadd.f32 %v1633, %v1842
    %v1939 = vadd.f32 %v1634, %v1845
    %v1940 = vadd.f32 %v1635, %v1850
    %v1941 = vadd.f32 %v1636, %v1853
    %v1942 = vadd.f32 %v1637, %v1858
    %v1943 = vadd.f32 %v1638, %v1861
    %v1944 = vadd.f32 %v1639, %v1866
    %v1945 = vadd.f32 %v1640, %v1869
    %v1946 = vadd.f32 %v1641, %v1874
    %v1947 = vadd.f32 %v1642, %v1877
    %v1948 = vadd.f32 %v1643, %v1882
    %v1949 = vadd.f32 %v1644, %v1885
    %v1950 = vadd.f32 %v1645, %v1890
    %v1951 = vadd.f32 %v1646, %v1893
    %v1952 = vadd.f32 %v1647, %v1898
    %v1953 = vadd.f32 %v1648, %v1901
    %v1954 = vadd.f32 %v1649, %v1906
    %v1955 = vadd.f32 %v1650, %v1909
    %v1956 = vadd.f32 %v1651, %v1914
    %v1957 = vadd.f32 %v1652, %v1917
    %v1958 = vadd.f32 %v1653, %v1922
    %v1959 = vadd.f32 %v1654, %v1925
    %v1960 = vand.u32 2147483647, %v1928
    %v1961 = vand.u32 2147483647, %v1929
    %v1962 = vand.u32 2147483647, %v1930
    %v1963 = vand.u32 2147483647, %v1931
    %v1964 = vand.u32 2147483647, %v1932
    %v1965 = vand.u32 2147483647, %v1933
    %v1966 = vand.u32 2147483647, %v1934
    %v1967 = vand.u32 2147483647, %v1935
    %v1968 = vand.u32 2147483647, %v1936
    %v1969 = vand.u32 2147483647, %v1937
    %v1970 = vand.u32 2147483647, %v1938
    %v1971 = vand.u32 2147483647, %v1939
    %v1972 = vand.u32 2147483647, %v1940
    %v1973 = vand.u32 2147483647, %v1941
    %v1974 = vand.u32 2147483647, %v1942
    %v1975 = vand.u32 2147483647, %v1943
    %v1976 = vand.u32 2147483647, %v1944
    %v1977 = vand.u32 2147483647, %v1945
    %v1978 = vand.u32 2147483647, %v1946
    %v1979 = vand.u32 2147483647, %v1947
    %v1980 = vand.u32 2147483647, %v1948
    %v1981 = vand.u32 2147483647, %v1949
    %v1982 = vand.u32 2147483647, %v1950
    %v1983 = vand.u32 2147483647, %v1951
    %v1984 = vand.u32 2147483647, %v1952
    %v1985 = vand.u32 2147483647, %v1953
    %v1986 = vand.u32 2147483647, %v1954
    %v1987 = vand.u32 2147483647, %v1955
    %v1988 = vand.u32 2147483647, %v1956
    %v1989 = vand.u32 2147483647, %v1957
    %v1990 = vand.u32 2147483647, %v1958
    %v1991 = vand.u32 2147483647, %v1959
    %v1992 = vmax.f32 %v1960, %v1964
    %v1993 = vmax.f32 %v1961, %v1965
    %v1994 = vmax.f32 %v1962, %v1966
    %v1995 = vmax.f32 %v1963, %v1967
    %v1996 = vmax.f32 %v1992, %v1968
    %v1997 = vmax.f32 %v1993, %v1969
    %v1998 = vmax.f32 %v1994, %v1970
    %v1999 = vmax.f32 %v1995, %v1971
    %v2000 = vmax.f32 %v1996, %v1972
    %v2001 = vmax.f32 %v1997, %v1973
    %v2002 = vmax.f32 %v1998, %v1974
    %v2003 = vmax.f32 %v1999, %v1975
    %v2004 = vmax.f32 %v2000, %v1976
    %v2005 = vmax.f32 %v2001, %v1977
    %v2006 = vmax.f32 %v2002, %v1978
    %v2007 = vmax.f32 %v2003, %v1979
    %v2008 = vmax.f32 %v2004, %v1980
    %v2009 = vmax.f32 %v2005, %v1981
    %v2010 = vmax.f32 %v2006, %v1982
    %v2011 = vmax.f32 %v2007, %v1983
    %v2012 = vmax.f32 %v2008, %v1984
    %v2013 = vmax.f32 %v2009, %v1985
    %v2014 = vmax.f32 %v2010, %v1986
    %v2015 = vmax.f32 %v2011, %v1987
    %v2016 = vmax.f32 %v2012, %v1988
    %v2017 = vmax.f32 %v2013, %v1989
    %v2018 = vmax.f32 %v2014, %v1990
    %v2019 = vmax.f32 %v2015, %v1991
    %v2020 = vmax.f32 %v2016, %v2017
    %v2021 = vmax.f32 %v2018, %v2019
    %v2022 = vmax.f32 %v2020, %v2021
    %v2023 = vrot.slane %v2022, 4
    %v2024 = vmax.f32 %v2022, %v2023
    %v2025 = vrot.slane %v2024, 2
    %v2026 = vmax.f32 %v2024, %v2025
    %v2027 = vrot.slane %v2026, 1
    %v2028 = vmax.f32 %v2026, %v2027
    %2029 = vmax.xlane.f32.xlu0 %v2028
    %v2030 = vpop.xlane.xlu0 %2029
    %v2031 = vadd.f32 %v2030, 1e-08
    %v2032 = vrcp.pop %v2031
    %v2033 = vmul.f32 %v1928, %v2032
    %v2034 = vmul.f32 %v1929, %v2032
    %v2035 = vmul.f32 %v1930, %v2032
    %v2036 = vmul.f32 %v1931, %v2032
    %v2037 = vmul.f32 %v1932, %v2032
    %v2038 = vmul.f32 %v1933, %v2032
    %v2039 = vmul.f32 %v1934, %v2032
    %v2040 = vmul.f32 %v1935, %v2032
    %v2041 = vmul.f32 %v1936, %v2032
    %v2042 = vmul.f32 %v1937, %v2032
    %v2043 = vmul.f32 %v1938, %v2032
    %v2044 = vmul.f32 %v1939, %v2032
    %v2045 = vmul.f32 %v1940, %v2032
    %v2046 = vmul.f32 %v1941, %v2032
    %v2047 = vmul.f32 %v1942, %v2032
    %v2048 = vmul.f32 %v1943, %v2032
    %v2049 = vmul.f32 %v1944, %v2032
    %v2050 = vmul.f32 %v1945, %v2032
    %v2051 = vmul.f32 %v1946, %v2032
    %v2052 = vmul.f32 %v1947, %v2032
    %v2053 = vmul.f32 %v1948, %v2032
    %v2054 = vmul.f32 %v1949, %v2032
    %v2055 = vmul.f32 %v1950, %v2032
    %v2056 = vmul.f32 %v1951, %v2032
    %v2057 = vmul.f32 %v1952, %v2032
    %v2058 = vmul.f32 %v1953, %v2032
    %v2059 = vmul.f32 %v1954, %v2032
    %v2060 = vmul.f32 %v1955, %v2032
    %v2061 = vmul.f32 %v1956, %v2032
    %v2062 = vmul.f32 %v1957, %v2032
    %v2063 = vmul.f32 %v1958, %v2032
    %v2064 = vmul.f32 %v1959, %v2032
    %2065 = vst [vmem:[#allocation3] sm:$0xff] %v2033
    %2066 = vst [vmem:[#allocation3 + $0x8] sm:$0xff] %v2034
    %2067 = vst [vmem:[#allocation3 + $0x10] sm:$0xff] %v2035
    %2068 = vst [vmem:[#allocation3 + $0x18] sm:$0xff] %v2036
    %2069 = vst [vmem:[#allocation3 + $0x20] sm:$0xff] %v2037
    %2070 = vst [vmem:[#allocation3 + $0x28] sm:$0xff] %v2038
    %2071 = vst [vmem:[#allocation3 + $0x30] sm:$0xff] %v2039
    %2072 = vst [vmem:[#allocation3 + $0x38] sm:$0xff] %v2040
    %2073 = vst [vmem:[#allocation3 + $0x40] sm:$0xff] %v2041
    %2074 = vst [vmem:[#allocation3 + $0x48] sm:$0xff] %v2042
    %2075 = vst [vmem:[#allocation3 + $0x50] sm:$0xff] %v2043
    %2076 = vst [vmem:[#allocation3 + $0x58] sm:$0xff] %v2044
    %2077 = vst [vmem:[#allocation3 + $0x60] sm:$0xff] %v2045
    %2078 = vst [vmem:[#allocation3 + $0x68] sm:$0xff] %v2046
    %2079 = vst [vmem:[#allocation3 + $0x70] sm:$0xff] %v2047
    %2080 = vst [vmem:[#allocation3 + $0x78] sm:$0xff] %v2048
    %2081 = vst [vmem:[#allocation3 + $0x80] sm:$0xff] %v2049
    %2082 = vst [vmem:[#allocation3 + $0x88] sm:$0xff] %v2050
    %2083 = vst [vmem:[#allocation3 + $0x90] sm:$0xff] %v2051
    %2084 = vst [vmem:[#allocation3 + $0x98] sm:$0xff] %v2052
    %2085 = vst [vmem:[#allocation3 + $0xa0] sm:$0xff] %v2053
    %2086 = vst [vmem:[#allocation3 + $0xa8] sm:$0xff] %v2054
    %2087 = vst [vmem:[#allocation3 + $0xb0] sm:$0xff] %v2055
    %2088 = vst [vmem:[#allocation3 + $0xb8] sm:$0xff] %v2056
    %2089 = vst [vmem:[#allocation3 + $0xc0] sm:$0xff] %v2057
    %2090 = vst [vmem:[#allocation3 + $0xc8] sm:$0xff] %v2058
    %2091 = vst [vmem:[#allocation3 + $0xd0] sm:$0xff] %v2059
    %2092 = vst [vmem:[#allocation3 + $0xd8] sm:$0xff] %v2060
    %2093 = vst [vmem:[#allocation3 + $0xe0] sm:$0xff] %v2061
    %2094 = vst [vmem:[#allocation3 + $0xe8] sm:$0xff] %v2062
    %2095 = vst [vmem:[#allocation3 + $0xf0] sm:$0xff] %v2063
    %2096 = vst [vmem:[#allocation3 + $0xf8] sm:$0xff] %v2064
    // Predicated region
    $region14: #{model_forward.1} parent=1 // pred_check
      _
    $region15: #{model_forward.1} parent=1 // pred_check_branch
      %2098 = sbr.rel (0) target = $region17
    $region16: #{model_forward.1} parent=1 // pred_region
      %s2100 = ssub.s32 4096, 4096
      %2101 = vsyncadd [#allocation4], %s2100
      %s2102 = sshll.u32 [#allocation3], 4
      %s2103 = int_to_ptr.vmem [resolvable:$true] %s2102
      %2108 = dma.vmem_to_hbm [thread:$0]  %s2103, 4096, %s3, [#allocation4], 128, 128, 8
    $region17: #{model_forward.1} parent=1 // pred_fallthru
      _
    // Predicated region
    $region18: #{model_forward.1} parent=1 // pred_check
      _
    $region19: #{model_forward.1} parent=1 // pred_check_branch
      %2110 = sbr.rel (0) target = $region21
    $region20: #{model_forward.1} parent=1 // pred_region
      %2111 = dma.done [#allocation4], 4096
    $region21: #{model_forward.1} parent=1 // pred_fallthru
      _
    %2112 = vsyncpa [#allocation4], 1

</llo_original>
